<compile_context>
chip_gen: v6e
topology: v6e:2x2x1
jax: 0.10.0
libtpu: 0.0.40
codegen_flags: <defaults>
</compile_context>

<pallas_src>
import jax
import jax.numpy as jnp
from jax import lax
from jax.experimental import pallas as pl
from jax.experimental.pallas import tpu as pltpu

# ----------------------------- problem sizes --------------------------------
BATCH = 8
C_IMG, H_IMG, W_IMG = 4, 4, 4
FEATURES = C_IMG * H_IMG * W_IMG          # 64
NUM_CLASSES = 10
C_PAD = 128                               # lane-dense padded class axis
LR = 0.1
NUM_TRAIN_BATCHES = 3
NUM_TEST_BATCHES = 2
EPOCHS = 2
NEG_INF = -1e30


# ----------------------------- in-kernel helpers ----------------------------
def _sgd_step(x, t, w, b):
    """One Trainer inner-loop step: fwd -> CE loss -> backward -> SGD update."""
    # forward: logits = x @ W + b (MXU), padded classes masked out
    logits = jnp.dot(x, w, preferred_element_type=jnp.float32) + b       # (B, C_PAD)
    col = lax.broadcasted_iota(jnp.int32, logits.shape, 1)               # (B, C_PAD)
    logits = jnp.where(col < NUM_CLASSES, logits, NEG_INF)

    # in-kernel one-hot targets (zero on padded columns by construction)
    y = (col == t).astype(jnp.float32)                                   # (B, C_PAD)

    # numerically-stable log-softmax
    m = jnp.max(logits, axis=-1, keepdims=True)                          # (B, 1)
    z = logits - m
    ez = jnp.exp(z)
    s = jnp.sum(ez, axis=-1, keepdims=True)                              # (B, 1)
    logp = z - jnp.log(s)                                                # (B, C_PAD)

    # criterion: nn.CrossEntropyLoss (mean reduction)
    per_row = -jnp.sum(y * logp, axis=-1, keepdims=True)                 # (B, 1)
    loss = jnp.sum(per_row, axis=0, keepdims=True) * (1.0 / BATCH)       # (1, 1)

    # backward: dL/dlogits = (softmax - onehot) / B (padded cols are exactly 0)
    p = ez * pl.reciprocal(s, approx=True)                               # (B, C_PAD)
    g = (p - y) * (1.0 / BATCH)                                          # (B, C_PAD)
    gw = lax.dot_general(x, g,                                           # x^T @ g, no XLU transpose
                         dimension_numbers=(((0,), (0,)), ((), ())),
                         preferred_element_type=jnp.float32)             # (D, C_PAD)
    gb = jnp.sum(g, axis=0, keepdims=True)                               # (1, C_PAD)

    # optimizer.step(): plain SGD; params carried in registers by the caller
    return loss, w - LR * gw, b - LR * gb


# ----------------------------- Pallas kernel ---------------------------------
def _trainer_kernel(xtr_ref, ttr_ref, xte_ref, tte_ref, w0_ref, b0_ref,
                    losses_ref, w_ref, b_ref, correct_ref):
    """Whole Trainer.forward() (all epochs/batches) + final Evaluator, one call."""
    w = w0_ref[...]                                   # (D, C_PAD) f32, register-resident
    b = b0_ref[...]                                   # (1, C_PAD) f32

    losses = jnp.zeros((EPOCHS, C_PAD), jnp.float32)
    row_id = lax.broadcasted_iota(jnp.int32, (EPOCHS, C_PAD), 0)

    # fully static epoch / mini-batch loops (trip count EPOCHS*NUM_TRAIN_BATCHES = 6)
    for e in range(EPOCHS):
        loss_sum = jnp.zeros((1, 1), jnp.float32)
        for i in range(NUM_TRAIN_BATCHES):
            x = xtr_ref[i]                            # (B, D)  f32, static index
            t = ttr_ref[i]                            # (B, 1)  int32
            loss, w, b = _sgd_step(x, t, w, b)
            loss_sum = loss_sum + loss
        losses = jnp.where(row_id == e, loss_sum, losses)   # fill epoch e row

    # write-once outputs (lane-dense)
    losses_ref[...] = losses
    w_ref[...] = w
    b_ref[...] = b

    # ---- Evaluator: one fused matmul over the whole test set ----
    xte = xte_ref[...]                                # (N_test*B, D)
    tte = tte_ref[...]                                # (N_test*B, 1) int32
    logits = jnp.dot(xte, w, preferred_element_type=jnp.float32) + b
    col = lax.broadcasted_iota(jnp.int32, logits.shape, 1)
    logits = jnp.where(col < NUM_CLASSES, logits, NEG_INF)

    # argmax over class axis (first occurrence, matching torch.argmax on ties)
    mx = jnp.max(logits, axis=-1, keepdims=True)                          # (NB, 1)
    pred = jnp.min(jnp.where(logits == mx, col, C_PAD),
                   axis=-1, keepdims=True)                                # (NB, 1)

    hits = (pred == tte).astype(jnp.int32)                                # (NB, 1)
    correct = jnp.sum(hits, axis=0, keepdims=True)                        # (1, 1)
    correct_ref[...] = jnp.broadcast_to(correct, correct_ref.shape)       # (1, C_PAD)


# ----------------------------- wrapper ----------------------------------------
@jax.jit
def run_trainer(train_x, train_t, test_x, test_t, w0, b0):
    """Full Trainer.forward() + final Evaluator.forward() in ONE pallas_call."""
    def vmem():
        return pl.BlockSpec(memory_space=pltpu.MemorySpace.VMEM)

    return pl.pallas_call(
        _trainer_kernel,
        # grid=() : single straight-line invocation, everything VMEM-resident
        in_specs=[vmem() for _ in range(6)],
        out_shape=(
            jax.ShapeDtypeStruct((EPOCHS, C_PAD), jnp.float32),           # per-epoch loss sums
            jax.ShapeDtypeStruct((FEATURES, C_PAD), jnp.float32),         # trained W
            jax.ShapeDtypeStruct((1, C_PAD), jnp.float32),                # trained b
            jax.ShapeDtypeStruct((1, C_PAD), jnp.int32),                  # test correct count
        ),
        out_specs=(vmem(), vmem(), vmem(), vmem()),
        input_output_aliases={4: 1, 5: 2},                                # w0->W, b0->b
    )(train_x, train_t, test_x, test_t, w0, b0)


# ----------------------------- driver ----------------------------------------
if __name__ == "__main__":
    key = jax.random.PRNGKey(0)
    k_w, k_train_x, k_train_t, k_test_x, k_test_t = jax.random.split(key, 5)

    # deterministic "model" parameters; class axis padded lane-dense to 128
    w_init = (jax.random.normal(k_w, (FEATURES, NUM_CLASSES), jnp.float32)
              * (1.0 / FEATURES ** 0.5))
    w0 = jnp.zeros((FEATURES, C_PAD), jnp.float32).at[:, :NUM_CLASSES].set(w_init)
    b0 = jnp.zeros((1, C_PAD), jnp.float32)

    # synthetic train / test "loaders" (NCHW images, int targets)
    train_x = jax.random.normal(
        k_train_x, (NUM_TRAIN_BATCHES, BATCH, C_IMG, H_IMG, W_IMG), jnp.float32)
    train_t = jax.random.randint(
        k_train_t, (NUM_TRAIN_BATCHES, BATCH), 0, NUM_CLASSES, jnp.int32)
    test_x = jax.random.normal(
        k_test_x, (NUM_TEST_BATCHES, BATCH, C_IMG, H_IMG, W_IMG), jnp.float32)
    test_t = jax.random.randint(
        k_test_t, (NUM_TEST_BATCHES, BATCH), 0, NUM_CLASSES, jnp.int32)

    # same row-major flatten as torch .view(B, -1)
    train_x_flat = train_x.reshape(NUM_TRAIN_BATCHES, BATCH, FEATURES)   # (N, B, D)
    train_t_col = train_t.reshape(NUM_TRAIN_BATCHES, BATCH, 1)           # (N, B, 1)
    test_x_flat = test_x.reshape(NUM_TEST_BATCHES * BATCH, FEATURES)     # (N*B, D)
    test_t_col = test_t.reshape(NUM_TEST_BATCHES * BATCH, 1)             # (N*B, 1)

    # ---- one fused pallas_call: all epochs of SGD + final test evaluation ----
    losses, w, b, correct = run_trainer(
        train_x_flat, train_t_col, test_x_flat, test_t_col, w0, b0)
    jax.block_until_ready((losses, w, b, correct))                       # single host sync

    epoch_loss_sums = jax.device_get(losses)[:, 0]
    for epoch in range(EPOCHS):
        print(f"[{epoch + 1}/{EPOCHS}] loss: "
              f"{float(epoch_loss_sums[epoch]) / NUM_TRAIN_BATCHES: 0.3f}")

    correct_n = int(jax.device_get(correct)[0, 0])
    data_size = NUM_TEST_BATCHES * BATCH
    print(f"accuracy: {correct_n / data_size * 100: 0.2f} %")

    print("KERNEL_OK")
</pallas_src>

<mosaic_0001>
module attributes {stable_mosaic.version = 11 : i64} {
  func.func @_trainer_kernel(%arg0: memref<3x8x64xf32, #tpu.memory_space<vmem>>, %arg1: memref<3x8x1xi32, #tpu.memory_space<vmem>>, %arg2: memref<16x64xf32, #tpu.memory_space<vmem>>, %arg3: memref<16x1xi32, #tpu.memory_space<vmem>>, %arg4: memref<64x128xf32, #tpu.memory_space<vmem>>, %arg5: memref<1x128xf32, #tpu.memory_space<vmem>>, %arg6: memref<2x128xf32, #tpu.memory_space<vmem>>, %arg7: memref<64x128xf32, #tpu.memory_space<vmem>>, %arg8: memref<1x128xf32, #tpu.memory_space<vmem>>, %arg9: memref<1x128xi32, #tpu.memory_space<vmem>>) attributes {dimension_semantics = [], scalar_prefetch = 0 : i64, scratch_operands = 0 : i64, tpu.core_type = #tpu.core_type<tc>} {
    %c0 = arith.constant 0 : index
    %c0_0 = arith.constant 0 : index
    %0 = vector.load %arg4[%c0, %c0_0] : memref<64x128xf32, #tpu.memory_space<vmem>>, vector<64x128xf32>
    %c0_1 = arith.constant 0 : index
    %c0_2 = arith.constant 0 : index
    %1 = vector.load %arg5[%c0_1, %c0_2] : memref<1x128xf32, #tpu.memory_space<vmem>>, vector<1x128xf32>
    %cst = arith.constant 0.000000e+00 : f32
    %2 = vector.broadcast %cst : f32 to vector<2x128xf32>
    %3 = tpu.iota {dimensions = array<i32: 0>} : vector<2x128xi32>
    %cst_3 = arith.constant 0.000000e+00 : f32
    %4 = vector.broadcast %cst_3 : f32 to vector<1x1xf32>
    %c0_4 = arith.constant 0 : index
    %c0_5 = arith.constant 0 : index
    %c0_6 = arith.constant 0 : index
    %5 = vector.load %arg0[%c0_4, %c0_5, %c0_6] : memref<3x8x64xf32, #tpu.memory_space<vmem>>, vector<1x8x64xf32>
    %6 = vector.shape_cast %5 : vector<1x8x64xf32> to vector<8x64xf32>
    %c0_7 = arith.constant 0 : index
    %c0_8 = arith.constant 0 : index
    %c0_9 = arith.constant 0 : index
    %7 = vector.load %arg1[%c0_7, %c0_8, %c0_9] : memref<3x8x1xi32, #tpu.memory_space<vmem>>, vector<1x8x1xi32>
    %8 = vector.shape_cast %7 : vector<1x8x1xi32> to vector<8x1xi32>
    %cst_10 = arith.constant dense<0.000000e+00> : vector<8x128xf32>
    %9 = tpu.matmul %6, %0, %cst_10 {dimension_numbers = #tpu.dot_dimension_numbers<[1], [0], [0], [1], [0, 0, 1, 1], [], []>} : vector<8x64xf32>, vector<64x128xf32>, vector<8x128xf32> -> vector<8x128xf32>
    %10 = vector.broadcast %1 : vector<1x128xf32> to vector<8x128xf32>
    %11 = arith.addf %9, %10 : vector<8x128xf32>
    %12 = tpu.iota {dimensions = array<i32: 1>} : vector<8x128xi32>
    %c10_i32 = arith.constant 10 : i32
    %13 = vector.broadcast %c10_i32 : i32 to vector<8x128xi32>
    %14 = arith.cmpi slt, %12, %13 : vector<8x128xi32>
    %cst_11 = arith.constant -1.000000e+30 : f32
    %15 = vector.broadcast %cst_11 : f32 to vector<8x128xf32>
    %16 = arith.select %14, %11, %15 : vector<8x128xi1>, vector<8x128xf32>
    %17 = vector.broadcast %8 : vector<8x1xi32> to vector<8x128xi32>
    %18 = arith.cmpi eq, %12, %17 : vector<8x128xi32>
    %19 = arith.extui %18 : vector<8x128xi1> to vector<8x128xi32>
    %20 = arith.sitofp %19 : vector<8x128xi32> to vector<8x128xf32>
    %cst_12 = arith.constant dense<0xFF800000> : vector<8xf32>
    %21 = vector.multi_reduction <maximumf>, %16, %cst_12 [1] : vector<8x128xf32> to vector<8xf32>
    %22 = vector.shape_cast %21 : vector<8xf32> to vector<8x1xf32>
    %23 = vector.broadcast %22 : vector<8x1xf32> to vector<8x128xf32>
    %24 = arith.subf %16, %23 : vector<8x128xf32>
    %25 = math.exp %24 : vector<8x128xf32>
    %cst_13 = arith.constant dense<0.000000e+00> : vector<8xf32>
    %26 = vector.multi_reduction <add>, %25, %cst_13 [1] : vector<8x128xf32> to vector<8xf32>
    %27 = vector.shape_cast %26 : vector<8xf32> to vector<8x1xf32>
    %28 = math.log %27 : vector<8x1xf32>
    %29 = vector.broadcast %28 : vector<8x1xf32> to vector<8x128xf32>
    %30 = arith.subf %24, %29 : vector<8x128xf32>
    %31 = arith.mulf %20, %30 : vector<8x128xf32>
    %cst_14 = arith.constant dense<0.000000e+00> : vector<8xf32>
    %32 = vector.multi_reduction <add>, %31, %cst_14 [1] : vector<8x128xf32> to vector<8xf32>
    %33 = vector.shape_cast %32 : vector<8xf32> to vector<8x1xf32>
    %cst_15 = arith.constant 0.000000e+00 : f32
    %34 = vector.broadcast %cst_15 : f32 to vector<8x1xf32>
    %35 = arith.subf %34, %33 : vector<8x1xf32>
    %cst_16 = arith.constant dense<0.000000e+00> : vector<1xf32>
    %36 = vector.multi_reduction <add>, %35, %cst_16 [0] : vector<8x1xf32> to vector<1xf32>
    %37 = vector.shape_cast %36 : vector<1xf32> to vector<1x1xf32>
    %cst_17 = arith.constant 1.250000e-01 : f32
    %38 = vector.broadcast %cst_17 : f32 to vector<1x1xf32>
    %39 = arith.mulf %37, %38 : vector<1x1xf32>
    %40 = tpu.reciprocal %27 {approx = true} : vector<8x1xf32> -> vector<8x1xf32>
    %41 = vector.broadcast %40 : vector<8x1xf32> to vector<8x128xf32>
    %42 = arith.mulf %25, %41 : vector<8x128xf32>
    %43 = arith.subf %42, %20 : vector<8x128xf32>
    %cst_18 = arith.constant 1.250000e-01 : f32
    %44 = vector.broadcast %cst_18 : f32 to vector<8x128xf32>
    %45 = arith.mulf %43, %44 : vector<8x128xf32>
    %cst_19 = arith.constant dense<0.000000e+00> : vector<64x128xf32>
    %46 = tpu.matmul %6, %45, %cst_19 {dimension_numbers = #tpu.dot_dimension_numbers<[0], [0], [1], [1], [0, 1, 1, 1], [], []>} : vector<8x64xf32>, vector<8x128xf32>, vector<64x128xf32> -> vector<64x128xf32>
    %cst_20 = arith.constant dense<0.000000e+00> : vector<128xf32>
    %47 = vector.multi_reduction <add>, %45, %cst_20 [0] : vector<8x128xf32> to vector<128xf32>
    %48 = vector.shape_cast %47 : vector<128xf32> to vector<1x128xf32>
    %cst_21 = arith.constant 1.000000e-01 : f32
    %49 = vector.broadcast %cst_21 : f32 to vector<64x128xf32>
    %50 = arith.mulf %49, %46 : vector<64x128xf32>
    %51 = arith.subf %0, %50 : vector<64x128xf32>
    %cst_22 = arith.constant 1.000000e-01 : f32
    %52 = vector.broadcast %cst_22 : f32 to vector<1x128xf32>
    %53 = arith.mulf %52, %48 : vector<1x128xf32>
    %54 = arith.subf %1, %53 : vector<1x128xf32>
    %55 = arith.addf %4, %39 : vector<1x1xf32>
    %c1 = arith.constant 1 : index
    %c0_23 = arith.constant 0 : index
    %c0_24 = arith.constant 0 : index
    %56 = vector.load %arg0[%c1, %c0_23, %c0_24] : memref<3x8x64xf32, #tpu.memory_space<vmem>>, vector<1x8x64xf32>
    %57 = vector.shape_cast %56 : vector<1x8x64xf32> to vector<8x64xf32>
    %c1_25 = arith.constant 1 : index
    %c0_26 = arith.constant 0 : index
    %c0_27 = arith.constant 0 : index
    %58 = vector.load %arg1[%c1_25, %c0_26, %c0_27] : memref<3x8x1xi32, #tpu.memory_space<vmem>>, vector<1x8x1xi32>
    %59 = vector.shape_cast %58 : vector<1x8x1xi32> to vector<8x1xi32>
    %cst_28 = arith.constant dense<0.000000e+00> : vector<8x128xf32>
    %60 = tpu.matmul %57, %51, %cst_28 {dimension_numbers = #tpu.dot_dimension_numbers<[1], [0], [0], [1], [0, 0, 1, 1], [], []>} : vector<8x64xf32>, vector<64x128xf32>, vector<8x128xf32> -> vector<8x128xf32>
    %61 = vector.broadcast %54 : vector<1x128xf32> to vector<8x128xf32>
    %62 = arith.addf %60, %61 : vector<8x128xf32>
    %63 = tpu.iota {dimensions = array<i32: 1>} : vector<8x128xi32>
    %c10_i32_29 = arith.constant 10 : i32
    %64 = vector.broadcast %c10_i32_29 : i32 to vector<8x128xi32>
    %65 = arith.cmpi slt, %63, %64 : vector<8x128xi32>
    %cst_30 = arith.constant -1.000000e+30 : f32
    %66 = vector.broadcast %cst_30 : f32 to vector<8x128xf32>
    %67 = arith.select %65, %62, %66 : vector<8x128xi1>, vector<8x128xf32>
    %68 = vector.broadcast %59 : vector<8x1xi32> to vector<8x128xi32>
    %69 = arith.cmpi eq, %63, %68 : vector<8x128xi32>
    %70 = arith.extui %69 : vector<8x128xi1> to vector<8x128xi32>
    %71 = arith.sitofp %70 : vector<8x128xi32> to vector<8x128xf32>
    %cst_31 = arith.constant dense<0xFF800000> : vector<8xf32>
    %72 = vector.multi_reduction <maximumf>, %67, %cst_31 [1] : vector<8x128xf32> to vector<8xf32>
    %73 = vector.shape_cast %72 : vector<8xf32> to vector<8x1xf32>
    %74 = vector.broadcast %73 : vector<8x1xf32> to vector<8x128xf32>
    %75 = arith.subf %67, %74 : vector<8x128xf32>
    %76 = math.exp %75 : vector<8x128xf32>
    %cst_32 = arith.constant dense<0.000000e+00> : vector<8xf32>
    %77 = vector.multi_reduction <add>, %76, %cst_32 [1] : vector<8x128xf32> to vector<8xf32>
    %78 = vector.shape_cast %77 : vector<8xf32> to vector<8x1xf32>
    %79 = math.log %78 : vector<8x1xf32>
    %80 = vector.broadcast %79 : vector<8x1xf32> to vector<8x128xf32>
    %81 = arith.subf %75, %80 : vector<8x128xf32>
    %82 = arith.mulf %71, %81 : vector<8x128xf32>
    %cst_33 = arith.constant dense<0.000000e+00> : vector<8xf32>
    %83 = vector.multi_reduction <add>, %82, %cst_33 [1] : vector<8x128xf32> to vector<8xf32>
    %84 = vector.shape_cast %83 : vector<8xf32> to vector<8x1xf32>
    %cst_34 = arith.constant 0.000000e+00 : f32
    %85 = vector.broadcast %cst_34 : f32 to vector<8x1xf32>
    %86 = arith.subf %85, %84 : vector<8x1xf32>
    %cst_35 = arith.constant dense<0.000000e+00> : vector<1xf32>
    %87 = vector.multi_reduction <add>, %86, %cst_35 [0] : vector<8x1xf32> to vector<1xf32>
    %88 = vector.shape_cast %87 : vector<1xf32> to vector<1x1xf32>
    %cst_36 = arith.constant 1.250000e-01 : f32
    %89 = vector.broadcast %cst_36 : f32 to vector<1x1xf32>
    %90 = arith.mulf %88, %89 : vector<1x1xf32>
    %91 = tpu.reciprocal %78 {approx = true} : vector<8x1xf32> -> vector<8x1xf32>
    %92 = vector.broadcast %91 : vector<8x1xf32> to vector<8x128xf32>
    %93 = arith.mulf %76, %92 : vector<8x128xf32>
    %94 = arith.subf %93, %71 : vector<8x128xf32>
    %cst_37 = arith.constant 1.250000e-01 : f32
    %95 = vector.broadcast %cst_37 : f32 to vector<8x128xf32>
    %96 = arith.mulf %94, %95 : vector<8x128xf32>
    %cst_38 = arith.constant dense<0.000000e+00> : vector<64x128xf32>
    %97 = tpu.matmul %57, %96, %cst_38 {dimension_numbers = #tpu.dot_dimension_numbers<[0], [0], [1], [1], [0, 1, 1, 1], [], []>} : vector<8x64xf32>, vector<8x128xf32>, vector<64x128xf32> -> vector<64x128xf32>
    %cst_39 = arith.constant dense<0.000000e+00> : vector<128xf32>
    %98 = vector.multi_reduction <add>, %96, %cst_39 [0] : vector<8x128xf32> to vector<128xf32>
    %99 = vector.shape_cast %98 : vector<128xf32> to vector<1x128xf32>
    %cst_40 = arith.constant 1.000000e-01 : f32
    %100 = vector.broadcast %cst_40 : f32 to vector<64x128xf32>
    %101 = arith.mulf %100, %97 : vector<64x128xf32>
    %102 = arith.subf %51, %101 : vector<64x128xf32>
    %cst_41 = arith.constant 1.000000e-01 : f32
    %103 = vector.broadcast %cst_41 : f32 to vector<1x128xf32>
    %104 = arith.mulf %103, %99 : vector<1x128xf32>
    %105 = arith.subf %54, %104 : vector<1x128xf32>
    %106 = arith.addf %55, %90 : vector<1x1xf32>
    %c2 = arith.constant 2 : index
    %c0_42 = arith.constant 0 : index
    %c0_43 = arith.constant 0 : index
    %107 = vector.load %arg0[%c2, %c0_42, %c0_43] : memref<3x8x64xf32, #tpu.memory_space<vmem>>, vector<1x8x64xf32>
    %108 = vector.shape_cast %107 : vector<1x8x64xf32> to vector<8x64xf32>
    %c2_44 = arith.constant 2 : index
    %c0_45 = arith.constant 0 : index
    %c0_46 = arith.constant 0 : index
    %109 = vector.load %arg1[%c2_44, %c0_45, %c0_46] : memref<3x8x1xi32, #tpu.memory_space<vmem>>, vector<1x8x1xi32>
    %110 = vector.shape_cast %109 : vector<1x8x1xi32> to vector<8x1xi32>
    %cst_47 = arith.constant dense<0.000000e+00> : vector<8x128xf32>
    %111 = tpu.matmul %108, %102, %cst_47 {dimension_numbers = #tpu.dot_dimension_numbers<[1], [0], [0], [1], [0, 0, 1, 1], [], []>} : vector<8x64xf32>, vector<64x128xf32>, vector<8x128xf32> -> vector<8x128xf32>
    %112 = vector.broadcast %105 : vector<1x128xf32> to vector<8x128xf32>
    %113 = arith.addf %111, %112 : vector<8x128xf32>
    %114 = tpu.iota {dimensions = array<i32: 1>} : vector<8x128xi32>
    %c10_i32_48 = arith.constant 10 : i32
    %115 = vector.broadcast %c10_i32_48 : i32 to vector<8x128xi32>
    %116 = arith.cmpi slt, %114, %115 : vector<8x128xi32>
    %cst_49 = arith.constant -1.000000e+30 : f32
    %117 = vector.broadcast %cst_49 : f32 to vector<8x128xf32>
    %118 = arith.select %116, %113, %117 : vector<8x128xi1>, vector<8x128xf32>
    %119 = vector.broadcast %110 : vector<8x1xi32> to vector<8x128xi32>
    %120 = arith.cmpi eq, %114, %119 : vector<8x128xi32>
    %121 = arith.extui %120 : vector<8x128xi1> to vector<8x128xi32>
    %122 = arith.sitofp %121 : vector<8x128xi32> to vector<8x128xf32>
    %cst_50 = arith.constant dense<0xFF800000> : vector<8xf32>
    %123 = vector.multi_reduction <maximumf>, %118, %cst_50 [1] : vector<8x128xf32> to vector<8xf32>
    %124 = vector.shape_cast %123 : vector<8xf32> to vector<8x1xf32>
    %125 = vector.broadcast %124 : vector<8x1xf32> to vector<8x128xf32>
    %126 = arith.subf %118, %125 : vector<8x128xf32>
    %127 = math.exp %126 : vector<8x128xf32>
    %cst_51 = arith.constant dense<0.000000e+00> : vector<8xf32>
    %128 = vector.multi_reduction <add>, %127, %cst_51 [1] : vector<8x128xf32> to vector<8xf32>
    %129 = vector.shape_cast %128 : vector<8xf32> to vector<8x1xf32>
    %130 = math.log %129 : vector<8x1xf32>
    %131 = vector.broadcast %130 : vector<8x1xf32> to vector<8x128xf32>
    %132 = arith.subf %126, %131 : vector<8x128xf32>
    %133 = arith.mulf %122, %132 : vector<8x128xf32>
    %cst_52 = arith.constant dense<0.000000e+00> : vector<8xf32>
    %134 = vector.multi_reduction <add>, %133, %cst_52 [1] : vector<8x128xf32> to vector<8xf32>
    %135 = vector.shape_cast %134 : vector<8xf32> to vector<8x1xf32>
    %cst_53 = arith.constant 0.000000e+00 : f32
    %136 = vector.broadcast %cst_53 : f32 to vector<8x1xf32>
    %137 = arith.subf %136, %135 : vector<8x1xf32>
    %cst_54 = arith.constant dense<0.000000e+00> : vector<1xf32>
    %138 = vector.multi_reduction <add>, %137, %cst_54 [0] : vector<8x1xf32> to vector<1xf32>
    %139 = vector.shape_cast %138 : vector<1xf32> to vector<1x1xf32>
    %cst_55 = arith.constant 1.250000e-01 : f32
    %140 = vector.broadcast %cst_55 : f32 to vector<1x1xf32>
    %141 = arith.mulf %139, %140 : vector<1x1xf32>
    %142 = tpu.reciprocal %129 {approx = true} : vector<8x1xf32> -> vector<8x1xf32>
    %143 = vector.broadcast %142 : vector<8x1xf32> to vector<8x128xf32>
    %144 = arith.mulf %127, %143 : vector<8x128xf32>
    %145 = arith.subf %144, %122 : vector<8x128xf32>
    %cst_56 = arith.constant 1.250000e-01 : f32
    %146 = vector.broadcast %cst_56 : f32 to vector<8x128xf32>
    %147 = arith.mulf %145, %146 : vector<8x128xf32>
    %cst_57 = arith.constant dense<0.000000e+00> : vector<64x128xf32>
    %148 = tpu.matmul %108, %147, %cst_57 {dimension_numbers = #tpu.dot_dimension_numbers<[0], [0], [1], [1], [0, 1, 1, 1], [], []>} : vector<8x64xf32>, vector<8x128xf32>, vector<64x128xf32> -> vector<64x128xf32>
    %cst_58 = arith.constant dense<0.000000e+00> : vector<128xf32>
    %149 = vector.multi_reduction <add>, %147, %cst_58 [0] : vector<8x128xf32> to vector<128xf32>
    %150 = vector.shape_cast %149 : vector<128xf32> to vector<1x128xf32>
    %cst_59 = arith.constant 1.000000e-01 : f32
    %151 = vector.broadcast %cst_59 : f32 to vector<64x128xf32>
    %152 = arith.mulf %151, %148 : vector<64x128xf32>
    %153 = arith.subf %102, %152 : vector<64x128xf32>
    %cst_60 = arith.constant 1.000000e-01 : f32
    %154 = vector.broadcast %cst_60 : f32 to vector<1x128xf32>
    %155 = arith.mulf %154, %150 : vector<1x128xf32>
    %156 = arith.subf %105, %155 : vector<1x128xf32>
    %157 = arith.addf %106, %141 : vector<1x1xf32>
    %c0_i32 = arith.constant 0 : i32
    %158 = vector.broadcast %c0_i32 : i32 to vector<2x128xi32>
    %159 = arith.cmpi eq, %3, %158 : vector<2x128xi32>
    %160 = vector.shape_cast %157 : vector<1x1xf32> to vector<1x1xf32>
    %161 = vector.broadcast %160 : vector<1x1xf32> to vector<2x128xf32>
    %162 = arith.select %159, %161, %2 : vector<2x128xi1>, vector<2x128xf32>
    %cst_61 = arith.constant 0.000000e+00 : f32
    %163 = vector.broadcast %cst_61 : f32 to vector<1x1xf32>
    %c0_62 = arith.constant 0 : index
    %c0_63 = arith.constant 0 : index
    %c0_64 = arith.constant 0 : index
    %164 = vector.load %arg0[%c0_62, %c0_63, %c0_64] : memref<3x8x64xf32, #tpu.memory_space<vmem>>, vector<1x8x64xf32>
    %165 = vector.shape_cast %164 : vector<1x8x64xf32> to vector<8x64xf32>
    %c0_65 = arith.constant 0 : index
    %c0_66 = arith.constant 0 : index
    %c0_67 = arith.constant 0 : index
    %166 = vector.load %arg1[%c0_65, %c0_66, %c0_67] : memref<3x8x1xi32, #tpu.memory_space<vmem>>, vector<1x8x1xi32>
    %167 = vector.shape_cast %166 : vector<1x8x1xi32> to vector<8x1xi32>
    %cst_68 = arith.constant dense<0.000000e+00> : vector<8x128xf32>
    %168 = tpu.matmul %165, %153, %cst_68 {dimension_numbers = #tpu.dot_dimension_numbers<[1], [0], [0], [1], [0, 0, 1, 1], [], []>} : vector<8x64xf32>, vector<64x128xf32>, vector<8x128xf32> -> vector<8x128xf32>
    %169 = vector.broadcast %156 : vector<1x128xf32> to vector<8x128xf32>
    %170 = arith.addf %168, %169 : vector<8x128xf32>
    %171 = tpu.iota {dimensions = array<i32: 1>} : vector<8x128xi32>
    %c10_i32_69 = arith.constant 10 : i32
    %172 = vector.broadcast %c10_i32_69 : i32 to vector<8x128xi32>
    %173 = arith.cmpi slt, %171, %172 : vector<8x128xi32>
    %cst_70 = arith.constant -1.000000e+30 : f32
    %174 = vector.broadcast %cst_70 : f32 to vector<8x128xf32>
    %175 = arith.select %173, %170, %174 : vector<8x128xi1>, vector<8x128xf32>
    %176 = vector.broadcast %167 : vector<8x1xi32> to vector<8x128xi32>
    %177 = arith.cmpi eq, %171, %176 : vector<8x128xi32>
    %178 = arith.extui %177 : vector<8x128xi1> to vector<8x128xi32>
    %179 = arith.sitofp %178 : vector<8x128xi32> to vector<8x128xf32>
    %cst_71 = arith.constant dense<0xFF800000> : vector<8xf32>
    %180 = vector.multi_reduction <maximumf>, %175, %cst_71 [1] : vector<8x128xf32> to vector<8xf32>
    %181 = vector.shape_cast %180 : vector<8xf32> to vector<8x1xf32>
    %182 = vector.broadcast %181 : vector<8x1xf32> to vector<8x128xf32>
    %183 = arith.subf %175, %182 : vector<8x128xf32>
    %184 = math.exp %183 : vector<8x128xf32>
    %cst_72 = arith.constant dense<0.000000e+00> : vector<8xf32>
    %185 = vector.multi_reduction <add>, %184, %cst_72 [1] : vector<8x128xf32> to vector<8xf32>
    %186 = vector.shape_cast %185 : vector<8xf32> to vector<8x1xf32>
    %187 = math.log %186 : vector<8x1xf32>
    %188 = vector.broadcast %187 : vector<8x1xf32> to vector<8x128xf32>
    %189 = arith.subf %183, %188 : vector<8x128xf32>
    %190 = arith.mulf %179, %189 : vector<8x128xf32>
    %cst_73 = arith.constant dense<0.000000e+00> : vector<8xf32>
    %191 = vector.multi_reduction <add>, %190, %cst_73 [1] : vector<8x128xf32> to vector<8xf32>
    %192 = vector.shape_cast %191 : vector<8xf32> to vector<8x1xf32>
    %cst_74 = arith.constant 0.000000e+00 : f32
    %193 = vector.broadcast %cst_74 : f32 to vector<8x1xf32>
    %194 = arith.subf %193, %192 : vector<8x1xf32>
    %cst_75 = arith.constant dense<0.000000e+00> : vector<1xf32>
    %195 = vector.multi_reduction <add>, %194, %cst_75 [0] : vector<8x1xf32> to vector<1xf32>
    %196 = vector.shape_cast %195 : vector<1xf32> to vector<1x1xf32>
    %cst_76 = arith.constant 1.250000e-01 : f32
    %197 = vector.broadcast %cst_76 : f32 to vector<1x1xf32>
    %198 = arith.mulf %196, %197 : vector<1x1xf32>
    %199 = tpu.reciprocal %186 {approx = true} : vector<8x1xf32> -> vector<8x1xf32>
    %200 = vector.broadcast %199 : vector<8x1xf32> to vector<8x128xf32>
    %201 = arith.mulf %184, %200 : vector<8x128xf32>
    %202 = arith.subf %201, %179 : vector<8x128xf32>
    %cst_77 = arith.constant 1.250000e-01 : f32
    %203 = vector.broadcast %cst_77 : f32 to vector<8x128xf32>
    %204 = arith.mulf %202, %203 : vector<8x128xf32>
    %cst_78 = arith.constant dense<0.000000e+00> : vector<64x128xf32>
    %205 = tpu.matmul %165, %204, %cst_78 {dimension_numbers = #tpu.dot_dimension_numbers<[0], [0], [1], [1], [0, 1, 1, 1], [], []>} : vector<8x64xf32>, vector<8x128xf32>, vector<64x128xf32> -> vector<64x128xf32>
    %cst_79 = arith.constant dense<0.000000e+00> : vector<128xf32>
    %206 = vector.multi_reduction <add>, %204, %cst_79 [0] : vector<8x128xf32> to vector<128xf32>
    %207 = vector.shape_cast %206 : vector<128xf32> to vector<1x128xf32>
    %cst_80 = arith.constant 1.000000e-01 : f32
    %208 = vector.broadcast %cst_80 : f32 to vector<64x128xf32>
    %209 = arith.mulf %208, %205 : vector<64x128xf32>
    %210 = arith.subf %153, %209 : vector<64x128xf32>
    %cst_81 = arith.constant 1.000000e-01 : f32
    %211 = vector.broadcast %cst_81 : f32 to vector<1x128xf32>
    %212 = arith.mulf %211, %207 : vector<1x128xf32>
    %213 = arith.subf %156, %212 : vector<1x128xf32>
    %214 = arith.addf %163, %198 : vector<1x1xf32>
    %c1_82 = arith.constant 1 : index
    %c0_83 = arith.constant 0 : index
    %c0_84 = arith.constant 0 : index
    %215 = vector.load %arg0[%c1_82, %c0_83, %c0_84] : memref<3x8x64xf32, #tpu.memory_space<vmem>>, vector<1x8x64xf32>
    %216 = vector.shape_cast %215 : vector<1x8x64xf32> to vector<8x64xf32>
    %c1_85 = arith.constant 1 : index
    %c0_86 = arith.constant 0 : index
    %c0_87 = arith.constant 0 : index
    %217 = vector.load %arg1[%c1_85, %c0_86, %c0_87] : memref<3x8x1xi32, #tpu.memory_space<vmem>>, vector<1x8x1xi32>
    %218 = vector.shape_cast %217 : vector<1x8x1xi32> to vector<8x1xi32>
    %cst_88 = arith.constant dense<0.000000e+00> : vector<8x128xf32>
    %219 = tpu.matmul %216, %210, %cst_88 {dimension_numbers = #tpu.dot_dimension_numbers<[1], [0], [0], [1], [0, 0, 1, 1], [], []>} : vector<8x64xf32>, vector<64x128xf32>, vector<8x128xf32> -> vector<8x128xf32>
    %220 = vector.broadcast %213 : vector<1x128xf32> to vector<8x128xf32>
    %221 = arith.addf %219, %220 : vector<8x128xf32>
    %222 = tpu.iota {dimensions = array<i32: 1>} : vector<8x128xi32>
    %c10_i32_89 = arith.constant 10 : i32
    %223 = vector.broadcast %c10_i32_89 : i32 to vector<8x128xi32>
    %224 = arith.cmpi slt, %222, %223 : vector<8x128xi32>
    %cst_90 = arith.constant -1.000000e+30 : f32
    %225 = vector.broadcast %cst_90 : f32 to vector<8x128xf32>
    %226 = arith.select %224, %221, %225 : vector<8x128xi1>, vector<8x128xf32>
    %227 = vector.broadcast %218 : vector<8x1xi32> to vector<8x128xi32>
    %228 = arith.cmpi eq, %222, %227 : vector<8x128xi32>
    %229 = arith.extui %228 : vector<8x128xi1> to vector<8x128xi32>
    %230 = arith.sitofp %229 : vector<8x128xi32> to vector<8x128xf32>
    %cst_91 = arith.constant dense<0xFF800000> : vector<8xf32>
    %231 = vector.multi_reduction <maximumf>, %226, %cst_91 [1] : vector<8x128xf32> to vector<8xf32>
    %232 = vector.shape_cast %231 : vector<8xf32> to vector<8x1xf32>
    %233 = vector.broadcast %232 : vector<8x1xf32> to vector<8x128xf32>
    %234 = arith.subf %226, %233 : vector<8x128xf32>
    %235 = math.exp %234 : vector<8x128xf32>
    %cst_92 = arith.constant dense<0.000000e+00> : vector<8xf32>
    %236 = vector.multi_reduction <add>, %235, %cst_92 [1] : vector<8x128xf32> to vector<8xf32>
    %237 = vector.shape_cast %236 : vector<8xf32> to vector<8x1xf32>
    %238 = math.log %237 : vector<8x1xf32>
    %239 = vector.broadcast %238 : vector<8x1xf32> to vector<8x128xf32>
    %240 = arith.subf %234, %239 : vector<8x128xf32>
    %241 = arith.mulf %230, %240 : vector<8x128xf32>
    %cst_93 = arith.constant dense<0.000000e+00> : vector<8xf32>
    %242 = vector.multi_reduction <add>, %241, %cst_93 [1] : vector<8x128xf32> to vector<8xf32>
    %243 = vector.shape_cast %242 : vector<8xf32> to vector<8x1xf32>
    %cst_94 = arith.constant 0.000000e+00 : f32
    %244 = vector.broadcast %cst_94 : f32 to vector<8x1xf32>
    %245 = arith.subf %244, %243 : vector<8x1xf32>
    %cst_95 = arith.constant dense<0.000000e+00> : vector<1xf32>
    %246 = vector.multi_reduction <add>, %245, %cst_95 [0] : vector<8x1xf32> to vector<1xf32>
    %247 = vector.shape_cast %246 : vector<1xf32> to vector<1x1xf32>
    %cst_96 = arith.constant 1.250000e-01 : f32
    %248 = vector.broadcast %cst_96 : f32 to vector<1x1xf32>
    %249 = arith.mulf %247, %248 : vector<1x1xf32>
    %250 = tpu.reciprocal %237 {approx = true} : vector<8x1xf32> -> vector<8x1xf32>
    %251 = vector.broadcast %250 : vector<8x1xf32> to vector<8x128xf32>
    %252 = arith.mulf %235, %251 : vector<8x128xf32>
    %253 = arith.subf %252, %230 : vector<8x128xf32>
    %cst_97 = arith.constant 1.250000e-01 : f32
    %254 = vector.broadcast %cst_97 : f32 to vector<8x128xf32>
    %255 = arith.mulf %253, %254 : vector<8x128xf32>
    %cst_98 = arith.constant dense<0.000000e+00> : vector<64x128xf32>
    %256 = tpu.matmul %216, %255, %cst_98 {dimension_numbers = #tpu.dot_dimension_numbers<[0], [0], [1], [1], [0, 1, 1, 1], [], []>} : vector<8x64xf32>, vector<8x128xf32>, vector<64x128xf32> -> vector<64x128xf32>
    %cst_99 = arith.constant dense<0.000000e+00> : vector<128xf32>
    %257 = vector.multi_reduction <add>, %255, %cst_99 [0] : vector<8x128xf32> to vector<128xf32>
    %258 = vector.shape_cast %257 : vector<128xf32> to vector<1x128xf32>
    %cst_100 = arith.constant 1.000000e-01 : f32
    %259 = vector.broadcast %cst_100 : f32 to vector<64x128xf32>
    %260 = arith.mulf %259, %256 : vector<64x128xf32>
    %261 = arith.subf %210, %260 : vector<64x128xf32>
    %cst_101 = arith.constant 1.000000e-01 : f32
    %262 = vector.broadcast %cst_101 : f32 to vector<1x128xf32>
    %263 = arith.mulf %262, %258 : vector<1x128xf32>
    %264 = arith.subf %213, %263 : vector<1x128xf32>
    %265 = arith.addf %214, %249 : vector<1x1xf32>
    %c2_102 = arith.constant 2 : index
    %c0_103 = arith.constant 0 : index
    %c0_104 = arith.constant 0 : index
    %266 = vector.load %arg0[%c2_102, %c0_103, %c0_104] : memref<3x8x64xf32, #tpu.memory_space<vmem>>, vector<1x8x64xf32>
    %267 = vector.shape_cast %266 : vector<1x8x64xf32> to vector<8x64xf32>
    %c2_105 = arith.constant 2 : index
    %c0_106 = arith.constant 0 : index
    %c0_107 = arith.constant 0 : index
    %268 = vector.load %arg1[%c2_105, %c0_106, %c0_107] : memref<3x8x1xi32, #tpu.memory_space<vmem>>, vector<1x8x1xi32>
    %269 = vector.shape_cast %268 : vector<1x8x1xi32> to vector<8x1xi32>
    %cst_108 = arith.constant dense<0.000000e+00> : vector<8x128xf32>
    %270 = tpu.matmul %267, %261, %cst_108 {dimension_numbers = #tpu.dot_dimension_numbers<[1], [0], [0], [1], [0, 0, 1, 1], [], []>} : vector<8x64xf32>, vector<64x128xf32>, vector<8x128xf32> -> vector<8x128xf32>
    %271 = vector.broadcast %264 : vector<1x128xf32> to vector<8x128xf32>
    %272 = arith.addf %270, %271 : vector<8x128xf32>
    %273 = tpu.iota {dimensions = array<i32: 1>} : vector<8x128xi32>
    %c10_i32_109 = arith.constant 10 : i32
    %274 = vector.broadcast %c10_i32_109 : i32 to vector<8x128xi32>
    %275 = arith.cmpi slt, %273, %274 : vector<8x128xi32>
    %cst_110 = arith.constant -1.000000e+30 : f32
    %276 = vector.broadcast %cst_110 : f32 to vector<8x128xf32>
    %277 = arith.select %275, %272, %276 : vector<8x128xi1>, vector<8x128xf32>
    %278 = vector.broadcast %269 : vector<8x1xi32> to vector<8x128xi32>
    %279 = arith.cmpi eq, %273, %278 : vector<8x128xi32>
    %280 = arith.extui %279 : vector<8x128xi1> to vector<8x128xi32>
    %281 = arith.sitofp %280 : vector<8x128xi32> to vector<8x128xf32>
    %cst_111 = arith.constant dense<0xFF800000> : vector<8xf32>
    %282 = vector.multi_reduction <maximumf>, %277, %cst_111 [1] : vector<8x128xf32> to vector<8xf32>
    %283 = vector.shape_cast %282 : vector<8xf32> to vector<8x1xf32>
    %284 = vector.broadcast %283 : vector<8x1xf32> to vector<8x128xf32>
    %285 = arith.subf %277, %284 : vector<8x128xf32>
    %286 = math.exp %285 : vector<8x128xf32>
    %cst_112 = arith.constant dense<0.000000e+00> : vector<8xf32>
    %287 = vector.multi_reduction <add>, %286, %cst_112 [1] : vector<8x128xf32> to vector<8xf32>
    %288 = vector.shape_cast %287 : vector<8xf32> to vector<8x1xf32>
    %289 = math.log %288 : vector<8x1xf32>
    %290 = vector.broadcast %289 : vector<8x1xf32> to vector<8x128xf32>
    %291 = arith.subf %285, %290 : vector<8x128xf32>
    %292 = arith.mulf %281, %291 : vector<8x128xf32>
    %cst_113 = arith.constant dense<0.000000e+00> : vector<8xf32>
    %293 = vector.multi_reduction <add>, %292, %cst_113 [1] : vector<8x128xf32> to vector<8xf32>
    %294 = vector.shape_cast %293 : vector<8xf32> to vector<8x1xf32>
    %cst_114 = arith.constant 0.000000e+00 : f32
    %295 = vector.broadcast %cst_114 : f32 to vector<8x1xf32>
    %296 = arith.subf %295, %294 : vector<8x1xf32>
    %cst_115 = arith.constant dense<0.000000e+00> : vector<1xf32>
    %297 = vector.multi_reduction <add>, %296, %cst_115 [0] : vector<8x1xf32> to vector<1xf32>
    %298 = vector.shape_cast %297 : vector<1xf32> to vector<1x1xf32>
    %cst_116 = arith.constant 1.250000e-01 : f32
    %299 = vector.broadcast %cst_116 : f32 to vector<1x1xf32>
    %300 = arith.mulf %298, %299 : vector<1x1xf32>
    %301 = tpu.reciprocal %288 {approx = true} : vector<8x1xf32> -> vector<8x1xf32>
    %302 = vector.broadcast %301 : vector<8x1xf32> to vector<8x128xf32>
    %303 = arith.mulf %286, %302 : vector<8x128xf32>
    %304 = arith.subf %303, %281 : vector<8x128xf32>
    %cst_117 = arith.constant 1.250000e-01 : f32
    %305 = vector.broadcast %cst_117 : f32 to vector<8x128xf32>
    %306 = arith.mulf %304, %305 : vector<8x128xf32>
    %cst_118 = arith.constant dense<0.000000e+00> : vector<64x128xf32>
    %307 = tpu.matmul %267, %306, %cst_118 {dimension_numbers = #tpu.dot_dimension_numbers<[0], [0], [1], [1], [0, 1, 1, 1], [], []>} : vector<8x64xf32>, vector<8x128xf32>, vector<64x128xf32> -> vector<64x128xf32>
    %cst_119 = arith.constant dense<0.000000e+00> : vector<128xf32>
    %308 = vector.multi_reduction <add>, %306, %cst_119 [0] : vector<8x128xf32> to vector<128xf32>
    %309 = vector.shape_cast %308 : vector<128xf32> to vector<1x128xf32>
    %cst_120 = arith.constant 1.000000e-01 : f32
    %310 = vector.broadcast %cst_120 : f32 to vector<64x128xf32>
    %311 = arith.mulf %310, %307 : vector<64x128xf32>
    %312 = arith.subf %261, %311 : vector<64x128xf32>
    %cst_121 = arith.constant 1.000000e-01 : f32
    %313 = vector.broadcast %cst_121 : f32 to vector<1x128xf32>
    %314 = arith.mulf %313, %309 : vector<1x128xf32>
    %315 = arith.subf %264, %314 : vector<1x128xf32>
    %316 = arith.addf %265, %300 : vector<1x1xf32>
    %c1_i32 = arith.constant 1 : i32
    %317 = vector.broadcast %c1_i32 : i32 to vector<2x128xi32>
    %318 = arith.cmpi eq, %3, %317 : vector<2x128xi32>
    %319 = vector.shape_cast %316 : vector<1x1xf32> to vector<1x1xf32>
    %320 = vector.broadcast %319 : vector<1x1xf32> to vector<2x128xf32>
    %321 = arith.select %318, %320, %162 : vector<2x128xi1>, vector<2x128xf32>
    %c0_122 = arith.constant 0 : index
    %c0_123 = arith.constant 0 : index
    %322 = vector.load %arg6[%c0_122, %c0_123] : memref<2x128xf32, #tpu.memory_space<vmem>>, vector<2x128xf32>
    tpu.vector_store %arg6[%c0_122, %c0_123], %321 {strides = array<i32>} : memref<2x128xf32, #tpu.memory_space<vmem>>, vector<2x128xf32>,
    %c0_124 = arith.constant 0 : index
    %c0_125 = arith.constant 0 : index
    %323 = vector.load %arg7[%c0_124, %c0_125] : memref<64x128xf32, #tpu.memory_space<vmem>>, vector<64x128xf32>
    tpu.vector_store %arg7[%c0_124, %c0_125], %312 {strides = array<i32>} : memref<64x128xf32, #tpu.memory_space<vmem>>, vector<64x128xf32>,
    %c0_126 = arith.constant 0 : index
    %c0_127 = arith.constant 0 : index
    %324 = vector.load %arg8[%c0_126, %c0_127] : memref<1x128xf32, #tpu.memory_space<vmem>>, vector<1x128xf32>
    tpu.vector_store %arg8[%c0_126, %c0_127], %315 {strides = array<i32>} : memref<1x128xf32, #tpu.memory_space<vmem>>, vector<1x128xf32>,
    %c0_128 = arith.constant 0 : index
    %c0_129 = arith.constant 0 : index
    %325 = vector.load %arg2[%c0_128, %c0_129] : memref<16x64xf32, #tpu.memory_space<vmem>>, vector<16x64xf32>
    %c0_130 = arith.constant 0 : index
    %c0_131 = arith.constant 0 : index
    %326 = vector.load %arg3[%c0_130, %c0_131] : memref<16x1xi32, #tpu.memory_space<vmem>>, vector<16x1xi32>
    %cst_132 = arith.constant dense<0.000000e+00> : vector<16x128xf32>
    %327 = tpu.matmul %325, %312, %cst_132 {dimension_numbers = #tpu.dot_dimension_numbers<[1], [0], [0], [1], [0, 0, 1, 1], [], []>} : vector<16x64xf32>, vector<64x128xf32>, vector<16x128xf32> -> vector<16x128xf32>
    %328 = vector.broadcast %315 : vector<1x128xf32> to vector<16x128xf32>
    %329 = arith.addf %327, %328 : vector<16x128xf32>
    %330 = tpu.iota {dimensions = array<i32: 1>} : vector<16x128xi32>
    %c10_i32_133 = arith.constant 10 : i32
    %331 = vector.broadcast %c10_i32_133 : i32 to vector<16x128xi32>
    %332 = arith.cmpi slt, %330, %331 : vector<16x128xi32>
    %cst_134 = arith.constant -1.000000e+30 : f32
    %333 = vector.broadcast %cst_134 : f32 to vector<16x128xf32>
    %334 = arith.select %332, %329, %333 : vector<16x128xi1>, vector<16x128xf32>
    %cst_135 = arith.constant dense<0xFF800000> : vector<16xf32>
    %335 = vector.multi_reduction <maximumf>, %334, %cst_135 [1] : vector<16x128xf32> to vector<16xf32>
    %336 = vector.shape_cast %335 : vector<16xf32> to vector<16x1xf32>
    %337 = vector.broadcast %336 : vector<16x1xf32> to vector<16x128xf32>
    %338 = arith.cmpf oeq, %334, %337 : vector<16x128xf32>
    %c128_i32 = arith.constant 128 : i32
    %339 = vector.broadcast %c128_i32 : i32 to vector<16x128xi32>
    %340 = arith.select %338, %330, %339 : vector<16x128xi1>, vector<16x128xi32>
    %cst_136 = arith.constant dense<2147483647> : vector<16xi32>
    %341 = vector.multi_reduction <minsi>, %340, %cst_136 [1] : vector<16x128xi32> to vector<16xi32>
    %342 = vector.shape_cast %341 : vector<16xi32> to vector<16x1xi32>
    %343 = arith.cmpi eq, %342, %326 : vector<16x1xi32>
    %344 = arith.extui %343 : vector<16x1xi1> to vector<16x1xi32>
    %cst_137 = arith.constant dense<0> : vector<1xi32>
    %345 = vector.multi_reduction <add>, %344, %cst_137 [0] : vector<16x1xi32> to vector<1xi32>
    %346 = vector.shape_cast %345 : vector<1xi32> to vector<1x1xi32>
    %347 = vector.shape_cast %346 : vector<1x1xi32> to vector<1x1xi32>
    %348 = vector.broadcast %347 : vector<1x1xi32> to vector<1x128xi32>
    %c0_138 = arith.constant 0 : index
    %c0_139 = arith.constant 0 : index
    %349 = vector.load %arg9[%c0_138, %c0_139] : memref<1x128xi32, #tpu.memory_space<vmem>>, vector<1x128xi32>
    tpu.vector_store %arg9[%c0_138, %c0_139], %348 {strides = array<i32>} : memref<1x128xi32, #tpu.memory_space<vmem>>, vector<1x128xi32>,
    return
  }
}

</mosaic_0001>

<llo_original>
// kernel: run_trainer.1
$region0: #{run_trainer.1}
  #allocation0 [shape = 'u32[]', space=smem, size = 0x4, offset = 0x4, fixed_abs, tag = 'smem constant byte address 0x4 - core index']
  #allocation1 [shape = 'u32[144,128]{1,0:T(1,128)}', space=vmem, size = 0x12000, scoped, tag = 'internal scratch']
  %s0 = inlined_call_operand.vmem [shape: f32[3,8,64], index: 0, kind: input, shape index: {}]
  %s1 = inlined_call_operand.vmem [shape: s32[3,8,1], index: 1, kind: input, shape index: {}]
  %s2 = inlined_call_operand.vmem [shape: f32[16,64], index: 2, kind: input, shape index: {}]
  %s3 = inlined_call_operand.vmem [shape: s32[16,1], index: 3, kind: input, shape index: {}]
  %s4 = inlined_call_operand.hbm [shape: f32[64,128], index: 4, kind: input, shape index: {}, may-alias: {4,7}]
  %s5 = inlined_call_operand.hbm [shape: f32[1,128], index: 5, kind: input, shape index: {}, may-alias: {5,8}]
  %s6 = inlined_call_operand.hbm [shape: f32[2,128], index: 6, kind: output, shape index: {0}]
  %s7 = inlined_call_operand.hbm [shape: f32[64,128], index: 7, kind: output, shape index: {1}, may-alias: {4,7}]
  %s8 = inlined_call_operand.hbm [shape: f32[1,128], index: 8, kind: output, shape index: {2}, may-alias: {5,8}]
  %s9 = inlined_call_operand.hbm [shape: s32[1,128], index: 9, kind: output, shape index: {3}]
  %10 = xla_tuple %s6, %s7, %s8, %s9
  %s11 = sld [smem:[#allocation0]]
  $region66: #{run_trainer.1} parent=0
    _
  %s13 = ssub.s32 1, %s11
  %s14 = scalar_select 0, %s13, %s11
  $region1: #{run_trainer.1} parent=0
    #allocation2 [shape = 'u8[32768]{0}', space=vmem, size = 0x8000, scoped, tag = 'input window, operand 4, single buffered']
    #allocation3 [shape = 's32[1]{0}', space=sflag, size = 0x4, scoped, tag = 'scoped memory for run_trainer.1']
    #allocation4 [shape = 's32[1]{0}', space=sflag, size = 0x4, scoped, tag = 'scoped memory for run_trainer.1']
    #allocation5 [shape = 'u8[512]{0}', space=vmem, size = 0x400, scoped, tag = 'input window, operand 5, single buffered']
    #allocation6 [shape = 's32[1]{0}', space=sflag, size = 0x4, scoped, tag = 'scoped memory for run_trainer.1']
    #allocation7 [shape = 'u8[1024]{0}', space=vmem, size = 0x400, scoped, tag = 'output window, operand 0, single buffered']
    #allocation8 [shape = 'u8[32768]{0}', space=vmem, size = 0x8000, scoped, tag = 'output window, operand 1, single buffered']
    #allocation9 [shape = 's32[1]{0}', space=sflag, size = 0x4, scoped, tag = 'scoped memory for run_trainer.1']
    #allocation10 [shape = 'u8[512]{0}', space=vmem, size = 0x400, scoped, tag = 'output window, operand 2, single buffered']
    #allocation11 [shape = 'u8[512]{0}', space=vmem, size = 0x400, scoped, tag = 'output window, operand 3, single buffered']
    #allocation12 [shape = 's32[1]{0}', space=sflag, size = 0x4, scoped, tag = 'scoped memory for run_trainer.1']
    %15 = vsyncpa [#allocation3], 0
    %16 = vsyncpa [#allocation6], 0
    %17 = vsyncpa [#allocation4], 0
    %18 = vsyncpa [#allocation9], 0
    %19 = vsyncpa [#allocation12], 0
    // Predicated region
    $region2: #{run_trainer.1} parent=1 // pred_check
      _
    $region3: #{run_trainer.1} parent=1 // pred_check_branch
      %21 = sbr.rel (0) target = $region5
    $region4: #{run_trainer.1} parent=1 // pred_region
      _
    $region5: #{run_trainer.1} parent=1 // pred_fallthru
      _
    // Predicated region
    $region6: #{run_trainer.1} parent=1 // pred_check
      _
    $region7: #{run_trainer.1} parent=1 // pred_check_branch
      %23 = sbr.rel (0) target = $region9
    $region8: #{run_trainer.1} parent=1 // pred_region
      _
    $region9: #{run_trainer.1} parent=1 // pred_fallthru
      _
    // Predicated region
    $region10: #{run_trainer.1} parent=1 // pred_check
      _
    $region11: #{run_trainer.1} parent=1 // pred_check_branch
      %25 = sbr.rel (0) target = $region13
    $region12: #{run_trainer.1} parent=1 // pred_region
      _
    $region13: #{run_trainer.1} parent=1 // pred_fallthru
      _
    // Predicated region
    $region14: #{run_trainer.1} parent=1 // pred_check
      _
    $region15: #{run_trainer.1} parent=1 // pred_check_branch
      %27 = sbr.rel (0) target = $region17
    $region16: #{run_trainer.1} parent=1 // pred_region
      _
    $region17: #{run_trainer.1} parent=1 // pred_fallthru
      _
    // Predicated region
    $region18: #{run_trainer.1} parent=1 // pred_check
      _
    $region19: #{run_trainer.1} parent=1 // pred_check_branch
      %29 = sbr.rel (0) target = $region21
    $region20: #{run_trainer.1} parent=1 // pred_region
      %s31 = ssub.s32 1024, 1024
      %32 = vsyncadd [#allocation3], %s31
      %s33 = sshll.u32 [#allocation2], 4
      %s34 = int_to_ptr.vmem [resolvable:$true] %s33
      %39 = dma.hbm_to_vmem [thread:$0]  %s4, 1024, %s34, [#allocation3], 128, 128, 8
    $region21: #{run_trainer.1} parent=1 // pred_fallthru
      _
    // Predicated region
    $region22: #{run_trainer.1} parent=1 // pred_check
      _
    $region23: #{run_trainer.1} parent=1 // pred_check_branch
      %41 = sbr.rel (0) target = $region25
    $region24: #{run_trainer.1} parent=1 // pred_region
      %s43 = ssub.s32 16, 16
      %44 = vsyncadd [#allocation6], %s43
      %s46 = sshll.u32 [#allocation5], 4
      %s47 = int_to_ptr.vmem [resolvable:$true] %s46
      %49 = dma.hbm_to_vmem [thread:$0]  %s5, 16, %s47, [#allocation6]
    $region25: #{run_trainer.1} parent=1 // pred_fallthru
      _
    // Predicated region
    $region26: #{run_trainer.1} parent=1 // pred_check
      _
    $region27: #{run_trainer.1} parent=1 // pred_check_branch
      %51 = sbr.rel (0) target = $region29
    $region28: #{run_trainer.1} parent=1 // pred_region
      %52 = dma.done [#allocation3], 1024
    $region29: #{run_trainer.1} parent=1 // pred_fallthru
      _
    // Predicated region
    $region30: #{run_trainer.1} parent=1 // pred_check
      _
    $region31: #{run_trainer.1} parent=1 // pred_check_branch
      %54 = sbr.rel (0) target = $region33
    $region32: #{run_trainer.1} parent=1 // pred_region
      %55 = dma.done [#allocation6], 16
    $region33: #{run_trainer.1} parent=1 // pred_fallthru
      _
    %v56 = vld [vmem:[#allocation2] sm:$0xff]
    %v57 = vld [vmem:[#allocation2 + $0x8] sm:$0xff]
    %v58 = vld [vmem:[#allocation2 + $0x10] sm:$0xff]
    %v59 = vld [vmem:[#allocation2 + $0x18] sm:$0xff]
    %v60 = vld [vmem:[#allocation2 + $0x20] sm:$0xff]
    %v61 = vld [vmem:[#allocation2 + $0x28] sm:$0xff]
    %v62 = vld [vmem:[#allocation2 + $0x30] sm:$0xff]
    %v63 = vld [vmem:[#allocation2 + $0x38] sm:$0xff]
    %v64 = vld [vmem:[#allocation5] sm:$0x1]
    %v65 = vlaneseq
    %v66 = vshrl.u32 %v65, 7
    %v67 = vld [vmem:[%s0] sm:$0xff]
    %v68 = vld [vmem:[%s1] sm:$0xff]
    %v70 = vlaneseq
    %v71 = vshrl.u32 %v70, 7
    %v72 = vsub.s32 0, %v71
    %v73 = vrot.slane %v64, %v72
    %vm75 = vcmask 523264
    %v77 = vsel %vm75, %v67, 0
    %79 = vmatprep.subr.mxu0 0.0
    %80 = vmatpush1.msra.mxu0 0.0
    %81 = vmatprep.subr.mxu0 0.0
    %82 = vmatpush1.msra.mxu0 0.0
    %83 = vmatprep.subr.mxu0 0.0
    %84 = vmatpush1.msra.mxu0 0.0
    %85 = vmatprep.subr.mxu0 0.0
    %86 = vmatpush1.msra.mxu0 0.0
    %87 = vmatprep.subr.mxu0 0.0
    %88 = vmatpush1.msra.mxu0 0.0
    %89 = vmatprep.subr.mxu0 0.0
    %90 = vmatpush1.msra.mxu0 0.0
    %91 = vmatprep.subr.mxu0 0.0
    %92 = vmatpush1.msra.mxu0 0.0
    %93 = vmatprep.subr.mxu0 0.0
    %94 = vmatpush1.msra.mxu0 0.0
    %95 = vmatprep.subr.mxu0 0.0
    %96 = vmatpush1.msra.mxu0 %v63
    %97 = vmatprep.subr.mxu0 0.0
    %98 = vmatpush1.msra.mxu0 %v62
    %99 = vmatprep.subr.mxu0 0.0
    %100 = vmatpush1.msra.mxu0 %v61
    %101 = vmatprep.subr.mxu0 0.0
    %102 = vmatpush1.msra.mxu0 %v60
    %103 = vmatprep.subr.mxu0 0.0
    %104 = vmatpush1.msra.mxu0 %v59
    %105 = vmatprep.subr.mxu0 0.0
    %106 = vmatpush1.msra.mxu0 %v58
    %107 = vmatprep.subr.mxu0 0.0
    %108 = vmatpush1.msra.mxu0 %v57
    %109 = vmatprep.subr.mxu0 0.0
    %110 = vmatpush1.msra.mxu0 %v56
    %111 = vmatprep.subr.mxu0 0.0
    %112 = vmatpush2.msra.mxu0 0.0
    %113 = vmatprep.subr.mxu0 0.0
    %114 = vmatpush2.msra.mxu0 0.0
    %115 = vmatprep.subr.mxu0 0.0
    %116 = vmatpush2.msra.mxu0 0.0
    %117 = vmatprep.subr.mxu0 0.0
    %118 = vmatpush2.msra.mxu0 0.0
    %119 = vmatprep.subr.mxu0 0.0
    %120 = vmatpush2.msra.mxu0 0.0
    %121 = vmatprep.subr.mxu0 0.0
    %122 = vmatpush2.msra.mxu0 0.0
    %123 = vmatprep.subr.mxu0 0.0
    %124 = vmatpush2.msra.mxu0 0.0
    %125 = vmatprep.subr.mxu0 0.0
    %126 = vmatpush2.msra.mxu0 0.0
    %127 = vmatprep.subr.mxu0 0.0
    %128 = vmatpush2.msra.mxu0 0.0
    %129 = vmatprep.subr.mxu0 0.0
    %130 = vmatpush2.msra.mxu0 0.0
    %131 = vmatprep.subr.mxu0 0.0
    %132 = vmatpush2.msra.mxu0 0.0
    %133 = vmatprep.subr.mxu0 0.0
    %134 = vmatpush2.msra.mxu0 0.0
    %135 = vmatprep.subr.mxu0 0.0
    %136 = vmatpush2.msra.mxu0 0.0
    %137 = vmatprep.subr.mxu0 0.0
    %138 = vmatpush2.msra.mxu0 0.0
    %139 = vmatprep.subr.mxu0 0.0
    %140 = vmatpush2.msra.mxu0 0.0
    %141 = vmatprep.subr.mxu0 0.0
    %142 = vmatpush2.msra.mxu0 0.0
    %143 = vmatprep.mubr.f32.mxu0 0.0
    %144 = vmatmul.mubr.f32.gmra.mxu0 %v77
    %v145 = vpop.f32.mrf.mxu0
    %v146 = vadd.f32 %v73, %v145
    %v147 = vpop.f32.mrf.mxu0
    %148 = vdwg.mxu0
    %v149 = vlaneseq
    %v150 = vand.u32 %v149, 127
    %vm151 = vcmp.lt.s32.totalorder %v150, 10
    %v152 = vsel %vm151, %v146, -1e+30
    %153 = vset.pattern.permute.xlu0 0
    %154 = vperm.xlu0 %153, %v68
    %v155 = vpop.permute.xlu0 %154
    %vm156 = vcmp.eq.s32.totalorder %v150, %v155
    %v157 = vsel %vm156, 1, 0
    %v158 = vcvt.s32.f32 %v157
    %159 = vmax.xlane.f32.xlu0 %v152
    %v160 = vpop.xlane.xlu0 %159
    %v161 = vsub.f32 %v152, %v160
    %v162 = vmul.f32 %v161, 1.442695
    %v163 = vpow.pop %v162
    %164 = vadd.xlane.f32.xlu0 %v163
    %v165 = vpop.xlane.xlu0 %164
    %v166 = vlog2.pop %v165
    %v167 = vmul.f32 %v166, 0.6931472
    %v168 = vsub.f32 %v161, %v167
    %v169 = vmul.f32 %v158, %v168
    %170 = vadd.xlane.f32.xlu0 %v169
    %v171 = vpop.xlane.xlu0 %170
    %v172 = vsub.f32 0.0, %v171
    %v173 = vrot.slane %v172, 4
    %v174 = vadd.f32 %v172, %v173
    %v175 = vrot.slane %v174, 2
    %v176 = vadd.f32 %v174, %v175
    %v177 = vrot.slane %v176, 1
    %v178 = vadd.f32 %v176, %v177
    %v179 = vmul.f32 %v178, 0.125
    %v180 = vrcp.pop %v165
    %v181 = vmul.f32 %v163, %v180
    %v182 = vsub.f32 %v181, %v158
    %v183 = vmul.f32 %v182, 0.125
    %184 = vxpose.xlu0.b32.start [1/16] %v67, 128
    %185 = vxpose.xlu0.b32.cont [2/16] 0.0, 128
    %186 = vxpose.xlu0.b32.cont [3/16] 0.0, 128
    %187 = vxpose.xlu0.b32.cont [4/16] 0.0, 128
    %188 = vxpose.xlu0.b32.cont [5/16] 0.0, 128
    %189 = vxpose.xlu0.b32.cont [6/16] 0.0, 128
    %190 = vxpose.xlu0.b32.cont [7/16] 0.0, 128
    %191 = vxpose.xlu0.b32.cont [8/16] 0.0, 128
    %192 = vxpose.xlu0.b32.cont [9/16] 0.0, 128
    %193 = vxpose.xlu0.b32.cont [10/16] 0.0, 128
    %194 = vxpose.xlu0.b32.cont [11/16] 0.0, 128
    %195 = vxpose.xlu0.b32.cont [12/16] 0.0, 128
    %196 = vxpose.xlu0.b32.cont [13/16] 0.0, 128
    %197 = vxpose.xlu0.b32.cont [14/16] 0.0, 128
    %198 = vxpose.xlu0.b32.cont [15/16] 0.0, 128
    %199 = vxpose.xlu0.b32.end [16/16] 0.0, 128
    %v200 = vpop.trf.xlu0
    %v201 = vpop.trf.xlu0
    %v202 = vpop.trf.xlu0
    %v203 = vpop.trf.xlu0
    %v204 = vpop.trf.xlu0
    %v205 = vpop.trf.xlu0
    %v206 = vpop.trf.xlu0
    %v207 = vpop.trf.xlu0
    %v208 = vpop.trf.xlu0
    %v209 = vpop.trf.xlu0
    %v210 = vpop.trf.xlu0
    %v211 = vpop.trf.xlu0
    %v212 = vpop.trf.xlu0
    %v213 = vpop.trf.xlu0
    %v214 = vpop.trf.xlu0
    %v215 = vpop.trf.xlu0
    %vm216 = vcmask 64512
    %v218 = vsel %vm216, %v200, 0
    %v221 = vsel %vm216, %v201, 0
    %v224 = vsel %vm216, %v202, 0
    %v227 = vsel %vm216, %v203, 0
    %v230 = vsel %vm216, %v204, 0
    %v233 = vsel %vm216, %v205, 0
    %v236 = vsel %vm216, %v206, 0
    %v239 = vsel %vm216, %v207, 0
    %241 = vmatprep.subr.mxu0 0.0
    %242 = vmatpush1.msra.mxu0 0.0
    %243 = vmatprep.subr.mxu0 0.0
    %244 = vmatpush1.msra.mxu0 0.0
    %245 = vmatprep.subr.mxu0 0.0
    %246 = vmatpush1.msra.mxu0 0.0
    %247 = vmatprep.subr.mxu0 0.0
    %248 = vmatpush1.msra.mxu0 0.0
    %249 = vmatprep.subr.mxu0 0.0
    %250 = vmatpush1.msra.mxu0 0.0
    %251 = vmatprep.subr.mxu0 0.0
    %252 = vmatpush1.msra.mxu0 0.0
    %253 = vmatprep.subr.mxu0 0.0
    %254 = vmatpush1.msra.mxu0 0.0
    %255 = vmatprep.subr.mxu0 0.0
    %256 = vmatpush1.msra.mxu0 0.0
    %257 = vmatprep.subr.mxu0 0.0
    %258 = vmatpush1.msra.mxu0 0.0
    %259 = vmatprep.subr.mxu0 0.0
    %260 = vmatpush1.msra.mxu0 0.0
    %261 = vmatprep.subr.mxu0 0.0
    %262 = vmatpush1.msra.mxu0 0.0
    %263 = vmatprep.subr.mxu0 0.0
    %264 = vmatpush1.msra.mxu0 0.0
    %265 = vmatprep.subr.mxu0 0.0
    %266 = vmatpush1.msra.mxu0 0.0
    %267 = vmatprep.subr.mxu0 0.0
    %268 = vmatpush1.msra.mxu0 0.0
    %269 = vmatprep.subr.mxu0 0.0
    %270 = vmatpush1.msra.mxu0 0.0
    %271 = vmatprep.subr.mxu0 0.0
    %272 = vmatpush1.msra.mxu0 %v183
    %273 = vmatprep.subr.mxu0 0.0
    %274 = vmatpush2.msra.mxu0 0.0
    %275 = vmatprep.subr.mxu0 0.0
    %276 = vmatpush2.msra.mxu0 0.0
    %277 = vmatprep.subr.mxu0 0.0
    %278 = vmatpush2.msra.mxu0 0.0
    %279 = vmatprep.subr.mxu0 0.0
    %280 = vmatpush2.msra.mxu0 0.0
    %281 = vmatprep.subr.mxu0 0.0
    %282 = vmatpush2.msra.mxu0 0.0
    %283 = vmatprep.subr.mxu0 0.0
    %284 = vmatpush2.msra.mxu0 0.0
    %285 = vmatprep.subr.mxu0 0.0
    %286 = vmatpush2.msra.mxu0 0.0
    %287 = vmatprep.subr.mxu0 0.0
    %288 = vmatpush2.msra.mxu0 0.0
    %289 = vmatprep.subr.mxu0 0.0
    %290 = vmatpush2.msra.mxu0 0.0
    %291 = vmatprep.subr.mxu0 0.0
    %292 = vmatpush2.msra.mxu0 0.0
    %293 = vmatprep.subr.mxu0 0.0
    %294 = vmatpush2.msra.mxu0 0.0
    %295 = vmatprep.subr.mxu0 0.0
    %296 = vmatpush2.msra.mxu0 0.0
    %297 = vmatprep.subr.mxu0 0.0
    %298 = vmatpush2.msra.mxu0 0.0
    %299 = vmatprep.subr.mxu0 0.0
    %300 = vmatpush2.msra.mxu0 0.0
    %301 = vmatprep.subr.mxu0 0.0
    %302 = vmatpush2.msra.mxu0 0.0
    %303 = vmatprep.subr.mxu0 0.0
    %304 = vmatpush2.msra.mxu0 0.0
    %305 = vmatprep.mubr.f32.mxu0 0.0
    %306 = vmatmul.mubr.f32.gmra.mxu0 %v218
    %v307 = vpop.f32.mrf.mxu0
    %v308 = vadd.f32 0.0, %v307
    %v309 = vpop.f32.mrf.mxu0
    %310 = vmatprep.mubr.f32.mxu0 0.0
    %311 = vmatmul.mubr.f32.gmra.mxu0 %v221
    %v312 = vpop.f32.mrf.mxu0
    %v313 = vadd.f32 0.0, %v312
    %v314 = vpop.f32.mrf.mxu0
    %315 = vmatprep.mubr.f32.mxu0 0.0
    %316 = vmatmul.mubr.f32.gmra.mxu0 %v224
    %v317 = vpop.f32.mrf.mxu0
    %v318 = vadd.f32 0.0, %v317
    %v319 = vpop.f32.mrf.mxu0
    %320 = vmatprep.mubr.f32.mxu0 0.0
    %321 = vmatmul.mubr.f32.gmra.mxu0 %v227
    %v322 = vpop.f32.mrf.mxu0
    %v323 = vadd.f32 0.0, %v322
    %v324 = vpop.f32.mrf.mxu0
    %325 = vmatprep.mubr.f32.mxu0 0.0
    %326 = vmatmul.mubr.f32.gmra.mxu0 %v230
    %v327 = vpop.f32.mrf.mxu0
    %v328 = vadd.f32 0.0, %v327
    %v329 = vpop.f32.mrf.mxu0
    %330 = vmatprep.mubr.f32.mxu0 0.0
    %331 = vmatmul.mubr.f32.gmra.mxu0 %v233
    %v332 = vpop.f32.mrf.mxu0
    %v333 = vadd.f32 0.0, %v332
    %v334 = vpop.f32.mrf.mxu0
    %335 = vmatprep.mubr.f32.mxu0 0.0
    %336 = vmatmul.mubr.f32.gmra.mxu0 %v236
    %v337 = vpop.f32.mrf.mxu0
    %v338 = vadd.f32 0.0, %v337
    %v339 = vpop.f32.mrf.mxu0
    %340 = vmatprep.mubr.f32.mxu0 0.0
    %341 = vmatmul.mubr.f32.gmra.mxu0 %v239
    %v342 = vpop.f32.mrf.mxu0
    %v343 = vadd.f32 0.0, %v342
    %v344 = vpop.f32.mrf.mxu0
    %345 = vdwg.mxu0
    %v346 = vrot.slane %v183, 4
    %v347 = vadd.f32 %v183, %v346
    %v348 = vrot.slane %v347, 2
    %v349 = vadd.f32 %v347, %v348
    %v350 = vrot.slane %v349, 1
    %v351 = vadd.f32 %v349, %v350
    %v352 = vmul.f32 %v308, 0.1
    %v353 = vmul.f32 %v313, 0.1
    %v354 = vmul.f32 %v318, 0.1
    %v355 = vmul.f32 %v323, 0.1
    %v356 = vmul.f32 %v328, 0.1
    %v357 = vmul.f32 %v333, 0.1
    %v358 = vmul.f32 %v338, 0.1
    %v359 = vmul.f32 %v343, 0.1
    %v360 = vsub.f32 %v56, %v352
    %v361 = vsub.f32 %v57, %v353
    %v362 = vsub.f32 %v58, %v354
    %v363 = vsub.f32 %v59, %v355
    %v364 = vsub.f32 %v60, %v356
    %v365 = vsub.f32 %v61, %v357
    %v366 = vsub.f32 %v62, %v358
    %v367 = vsub.f32 %v63, %v359
    %v368 = vmul.f32 %v351, 0.1
    %v369 = vsub.f32 %v64, %v368
    %v370 = vadd.f32 %v179, 0.0
    %s371 = scalar_lea.vmem %s0, 8
    %v372 = vld [vmem:[%s371] sm:$0xff]
    %s373 = scalar_lea.vmem %s1, 8
    %v374 = vld [vmem:[%s373] sm:$0xff]
    %v376 = vlaneseq
    %v377 = vshrl.u32 %v376, 7
    %v378 = vsub.s32 0, %v377
    %v379 = vrot.slane %v369, %v378
    %v382 = vsel %vm75, %v372, 0
    %384 = vmatprep.subr.mxu0 0.0
    %385 = vmatpush1.msra.mxu0 0.0
    %386 = vmatprep.subr.mxu0 0.0
    %387 = vmatpush1.msra.mxu0 0.0
    %388 = vmatprep.subr.mxu0 0.0
    %389 = vmatpush1.msra.mxu0 0.0
    %390 = vmatprep.subr.mxu0 0.0
    %391 = vmatpush1.msra.mxu0 0.0
    %392 = vmatprep.subr.mxu0 0.0
    %393 = vmatpush1.msra.mxu0 0.0
    %394 = vmatprep.subr.mxu0 0.0
    %395 = vmatpush1.msra.mxu0 0.0
    %396 = vmatprep.subr.mxu0 0.0
    %397 = vmatpush1.msra.mxu0 0.0
    %398 = vmatprep.subr.mxu0 0.0
    %399 = vmatpush1.msra.mxu0 0.0
    %400 = vmatprep.subr.mxu0 0.0
    %401 = vmatpush1.msra.mxu0 %v367
    %402 = vmatprep.subr.mxu0 0.0
    %403 = vmatpush1.msra.mxu0 %v366
    %404 = vmatprep.subr.mxu0 0.0
    %405 = vmatpush1.msra.mxu0 %v365
    %406 = vmatprep.subr.mxu0 0.0
    %407 = vmatpush1.msra.mxu0 %v364
    %408 = vmatprep.subr.mxu0 0.0
    %409 = vmatpush1.msra.mxu0 %v363
    %410 = vmatprep.subr.mxu0 0.0
    %411 = vmatpush1.msra.mxu0 %v362
    %412 = vmatprep.subr.mxu0 0.0
    %413 = vmatpush1.msra.mxu0 %v361
    %414 = vmatprep.subr.mxu0 0.0
    %415 = vmatpush1.msra.mxu0 %v360
    %416 = vmatprep.subr.mxu0 0.0
    %417 = vmatpush2.msra.mxu0 0.0
    %418 = vmatprep.subr.mxu0 0.0
    %419 = vmatpush2.msra.mxu0 0.0
    %420 = vmatprep.subr.mxu0 0.0
    %421 = vmatpush2.msra.mxu0 0.0
    %422 = vmatprep.subr.mxu0 0.0
    %423 = vmatpush2.msra.mxu0 0.0
    %424 = vmatprep.subr.mxu0 0.0
    %425 = vmatpush2.msra.mxu0 0.0
    %426 = vmatprep.subr.mxu0 0.0
    %427 = vmatpush2.msra.mxu0 0.0
    %428 = vmatprep.subr.mxu0 0.0
    %429 = vmatpush2.msra.mxu0 0.0
    %430 = vmatprep.subr.mxu0 0.0
    %431 = vmatpush2.msra.mxu0 0.0
    %432 = vmatprep.subr.mxu0 0.0
    %433 = vmatpush2.msra.mxu0 0.0
    %434 = vmatprep.subr.mxu0 0.0
    %435 = vmatpush2.msra.mxu0 0.0
    %436 = vmatprep.subr.mxu0 0.0
    %437 = vmatpush2.msra.mxu0 0.0
    %438 = vmatprep.subr.mxu0 0.0
    %439 = vmatpush2.msra.mxu0 0.0
    %440 = vmatprep.subr.mxu0 0.0
    %441 = vmatpush2.msra.mxu0 0.0
    %442 = vmatprep.subr.mxu0 0.0
    %443 = vmatpush2.msra.mxu0 0.0
    %444 = vmatprep.subr.mxu0 0.0
    %445 = vmatpush2.msra.mxu0 0.0
    %446 = vmatprep.subr.mxu0 0.0
    %447 = vmatpush2.msra.mxu0 0.0
    %448 = vmatprep.mubr.f32.mxu0 0.0
    %449 = vmatmul.mubr.f32.gmra.mxu0 %v382
    %v450 = vpop.f32.mrf.mxu0
    %v451 = vadd.f32 %v379, %v450
    %v452 = vpop.f32.mrf.mxu0
    %453 = vdwg.mxu0
    %v454 = vsel %vm151, %v451, -1e+30
    %455 = vset.pattern.permute.xlu0 0
    %456 = vperm.xlu0 %455, %v374
    %v457 = vpop.permute.xlu0 %456
    %vm458 = vcmp.eq.s32.totalorder %v150, %v457
    %v459 = vsel %vm458, 1, 0
    %v460 = vcvt.s32.f32 %v459
    %461 = vmax.xlane.f32.xlu0 %v454
    %v462 = vpop.xlane.xlu0 %461
    %v463 = vsub.f32 %v454, %v462
    %v464 = vmul.f32 %v463, 1.442695
    %v465 = vpow.pop %v464
    %466 = vadd.xlane.f32.xlu0 %v465
    %v467 = vpop.xlane.xlu0 %466
    %v468 = vlog2.pop %v467
    %v469 = vmul.f32 %v468, 0.6931472
    %v470 = vsub.f32 %v463, %v469
    %v471 = vmul.f32 %v460, %v470
    %472 = vadd.xlane.f32.xlu0 %v471
    %v473 = vpop.xlane.xlu0 %472
    %v474 = vsub.f32 0.0, %v473
    %v475 = vrot.slane %v474, 4
    %v476 = vadd.f32 %v474, %v475
    %v477 = vrot.slane %v476, 2
    %v478 = vadd.f32 %v476, %v477
    %v479 = vrot.slane %v478, 1
    %v480 = vadd.f32 %v478, %v479
    %v481 = vmul.f32 %v480, 0.125
    %v482 = vrcp.pop %v467
    %v483 = vmul.f32 %v465, %v482
    %v484 = vsub.f32 %v483, %v460
    %v485 = vmul.f32 %v484, 0.125
    %486 = vxpose.xlu0.b32.start [1/16] %v372, 128
    %487 = vxpose.xlu0.b32.cont [2/16] 0.0, 128
    %488 = vxpose.xlu0.b32.cont [3/16] 0.0, 128
    %489 = vxpose.xlu0.b32.cont [4/16] 0.0, 128
    %490 = vxpose.xlu0.b32.cont [5/16] 0.0, 128
    %491 = vxpose.xlu0.b32.cont [6/16] 0.0, 128
    %492 = vxpose.xlu0.b32.cont [7/16] 0.0, 128
    %493 = vxpose.xlu0.b32.cont [8/16] 0.0, 128
    %494 = vxpose.xlu0.b32.cont [9/16] 0.0, 128
    %495 = vxpose.xlu0.b32.cont [10/16] 0.0, 128
    %496 = vxpose.xlu0.b32.cont [11/16] 0.0, 128
    %497 = vxpose.xlu0.b32.cont [12/16] 0.0, 128
    %498 = vxpose.xlu0.b32.cont [13/16] 0.0, 128
    %499 = vxpose.xlu0.b32.cont [14/16] 0.0, 128
    %500 = vxpose.xlu0.b32.cont [15/16] 0.0, 128
    %501 = vxpose.xlu0.b32.end [16/16] 0.0, 128
    %v502 = vpop.trf.xlu0
    %v503 = vpop.trf.xlu0
    %v504 = vpop.trf.xlu0
    %v505 = vpop.trf.xlu0
    %v506 = vpop.trf.xlu0
    %v507 = vpop.trf.xlu0
    %v508 = vpop.trf.xlu0
    %v509 = vpop.trf.xlu0
    %v510 = vpop.trf.xlu0
    %v511 = vpop.trf.xlu0
    %v512 = vpop.trf.xlu0
    %v513 = vpop.trf.xlu0
    %v514 = vpop.trf.xlu0
    %v515 = vpop.trf.xlu0
    %v516 = vpop.trf.xlu0
    %v517 = vpop.trf.xlu0
    %v519 = vsel %vm216, %v502, 0
    %v522 = vsel %vm216, %v503, 0
    %v525 = vsel %vm216, %v504, 0
    %v528 = vsel %vm216, %v505, 0
    %v531 = vsel %vm216, %v506, 0
    %v534 = vsel %vm216, %v507, 0
    %v537 = vsel %vm216, %v508, 0
    %v540 = vsel %vm216, %v509, 0
    %542 = vmatprep.subr.mxu0 0.0
    %543 = vmatpush1.msra.mxu0 0.0
    %544 = vmatprep.subr.mxu0 0.0
    %545 = vmatpush1.msra.mxu0 0.0
    %546 = vmatprep.subr.mxu0 0.0
    %547 = vmatpush1.msra.mxu0 0.0
    %548 = vmatprep.subr.mxu0 0.0
    %549 = vmatpush1.msra.mxu0 0.0
    %550 = vmatprep.subr.mxu0 0.0
    %551 = vmatpush1.msra.mxu0 0.0
    %552 = vmatprep.subr.mxu0 0.0
    %553 = vmatpush1.msra.mxu0 0.0
    %554 = vmatprep.subr.mxu0 0.0
    %555 = vmatpush1.msra.mxu0 0.0
    %556 = vmatprep.subr.mxu0 0.0
    %557 = vmatpush1.msra.mxu0 0.0
    %558 = vmatprep.subr.mxu0 0.0
    %559 = vmatpush1.msra.mxu0 0.0
    %560 = vmatprep.subr.mxu0 0.0
    %561 = vmatpush1.msra.mxu0 0.0
    %562 = vmatprep.subr.mxu0 0.0
    %563 = vmatpush1.msra.mxu0 0.0
    %564 = vmatprep.subr.mxu0 0.0
    %565 = vmatpush1.msra.mxu0 0.0
    %566 = vmatprep.subr.mxu0 0.0
    %567 = vmatpush1.msra.mxu0 0.0
    %568 = vmatprep.subr.mxu0 0.0
    %569 = vmatpush1.msra.mxu0 0.0
    %570 = vmatprep.subr.mxu0 0.0
    %571 = vmatpush1.msra.mxu0 0.0
    %572 = vmatprep.subr.mxu0 0.0
    %573 = vmatpush1.msra.mxu0 %v485
    %574 = vmatprep.subr.mxu0 0.0
    %575 = vmatpush2.msra.mxu0 0.0
    %576 = vmatprep.subr.mxu0 0.0
    %577 = vmatpush2.msra.mxu0 0.0
    %578 = vmatprep.subr.mxu0 0.0
    %579 = vmatpush2.msra.mxu0 0.0
    %580 = vmatprep.subr.mxu0 0.0
    %581 = vmatpush2.msra.mxu0 0.0
    %582 = vmatprep.subr.mxu0 0.0
    %583 = vmatpush2.msra.mxu0 0.0
    %584 = vmatprep.subr.mxu0 0.0
    %585 = vmatpush2.msra.mxu0 0.0
    %586 = vmatprep.subr.mxu0 0.0
    %587 = vmatpush2.msra.mxu0 0.0
    %588 = vmatprep.subr.mxu0 0.0
    %589 = vmatpush2.msra.mxu0 0.0
    %590 = vmatprep.subr.mxu0 0.0
    %591 = vmatpush2.msra.mxu0 0.0
    %592 = vmatprep.subr.mxu0 0.0
    %593 = vmatpush2.msra.mxu0 0.0
    %594 = vmatprep.subr.mxu0 0.0
    %595 = vmatpush2.msra.mxu0 0.0
    %596 = vmatprep.subr.mxu0 0.0
    %597 = vmatpush2.msra.mxu0 0.0
    %598 = vmatprep.subr.mxu0 0.0
    %599 = vmatpush2.msra.mxu0 0.0
    %600 = vmatprep.subr.mxu0 0.0
    %601 = vmatpush2.msra.mxu0 0.0
    %602 = vmatprep.subr.mxu0 0.0
    %603 = vmatpush2.msra.mxu0 0.0
    %604 = vmatprep.subr.mxu0 0.0
    %605 = vmatpush2.msra.mxu0 0.0
    %606 = vmatprep.mubr.f32.mxu0 0.0
    %607 = vmatmul.mubr.f32.gmra.mxu0 %v519
    %v608 = vpop.f32.mrf.mxu0
    %v609 = vadd.f32 0.0, %v608
    %v610 = vpop.f32.mrf.mxu0
    %611 = vmatprep.mubr.f32.mxu0 0.0
    %612 = vmatmul.mubr.f32.gmra.mxu0 %v522
    %v613 = vpop.f32.mrf.mxu0
    %v614 = vadd.f32 0.0, %v613
    %v615 = vpop.f32.mrf.mxu0
    %616 = vmatprep.mubr.f32.mxu0 0.0
    %617 = vmatmul.mubr.f32.gmra.mxu0 %v525
    %v618 = vpop.f32.mrf.mxu0
    %v619 = vadd.f32 0.0, %v618
    %v620 = vpop.f32.mrf.mxu0
    %621 = vmatprep.mubr.f32.mxu0 0.0
    %622 = vmatmul.mubr.f32.gmra.mxu0 %v528
    %v623 = vpop.f32.mrf.mxu0
    %v624 = vadd.f32 0.0, %v623
    %v625 = vpop.f32.mrf.mxu0
    %626 = vmatprep.mubr.f32.mxu0 0.0
    %627 = vmatmul.mubr.f32.gmra.mxu0 %v531
    %v628 = vpop.f32.mrf.mxu0
    %v629 = vadd.f32 0.0, %v628
    %v630 = vpop.f32.mrf.mxu0
    %631 = vmatprep.mubr.f32.mxu0 0.0
    %632 = vmatmul.mubr.f32.gmra.mxu0 %v534
    %v633 = vpop.f32.mrf.mxu0
    %v634 = vadd.f32 0.0, %v633
    %v635 = vpop.f32.mrf.mxu0
    %636 = vmatprep.mubr.f32.mxu0 0.0
    %637 = vmatmul.mubr.f32.gmra.mxu0 %v537
    %v638 = vpop.f32.mrf.mxu0
    %v639 = vadd.f32 0.0, %v638
    %v640 = vpop.f32.mrf.mxu0
    %641 = vmatprep.mubr.f32.mxu0 0.0
    %642 = vmatmul.mubr.f32.gmra.mxu0 %v540
    %v643 = vpop.f32.mrf.mxu0
    %v644 = vadd.f32 0.0, %v643
    %v645 = vpop.f32.mrf.mxu0
    %646 = vdwg.mxu0
    %v647 = vrot.slane %v485, 4
    %v648 = vadd.f32 %v485, %v647
    %v649 = vrot.slane %v648, 2
    %v650 = vadd.f32 %v648, %v649
    %v651 = vrot.slane %v650, 1
    %v652 = vadd.f32 %v650, %v651
    %v653 = vmul.f32 %v609, 0.1
    %v654 = vmul.f32 %v614, 0.1
    %v655 = vmul.f32 %v619, 0.1
    %v656 = vmul.f32 %v624, 0.1
    %v657 = vmul.f32 %v629, 0.1
    %v658 = vmul.f32 %v634, 0.1
    %v659 = vmul.f32 %v639, 0.1
    %v660 = vmul.f32 %v644, 0.1
    %v661 = vsub.f32 %v360, %v653
    %v662 = vsub.f32 %v361, %v654
    %v663 = vsub.f32 %v362, %v655
    %v664 = vsub.f32 %v363, %v656
    %v665 = vsub.f32 %v364, %v657
    %v666 = vsub.f32 %v365, %v658
    %v667 = vsub.f32 %v366, %v659
    %v668 = vsub.f32 %v367, %v660
    %v669 = vmul.f32 %v652, 0.1
    %v670 = vsub.f32 %v369, %v669
    %v671 = vadd.f32 %v370, %v481
    %s672 = scalar_lea.vmem %s0, 16
    %v673 = vld [vmem:[%s672] sm:$0xff]
    %s674 = scalar_lea.vmem %s1, 16
    %v675 = vld [vmem:[%s674] sm:$0xff]
    %v677 = vlaneseq
    %v678 = vshrl.u32 %v677, 7
    %v679 = vsub.s32 0, %v678
    %v680 = vrot.slane %v670, %v679
    %v683 = vsel %vm75, %v673, 0
    %685 = vmatprep.subr.mxu0 0.0
    %686 = vmatpush1.msra.mxu0 0.0
    %687 = vmatprep.subr.mxu0 0.0
    %688 = vmatpush1.msra.mxu0 0.0
    %689 = vmatprep.subr.mxu0 0.0
    %690 = vmatpush1.msra.mxu0 0.0
    %691 = vmatprep.subr.mxu0 0.0
    %692 = vmatpush1.msra.mxu0 0.0
    %693 = vmatprep.subr.mxu0 0.0
    %694 = vmatpush1.msra.mxu0 0.0
    %695 = vmatprep.subr.mxu0 0.0
    %696 = vmatpush1.msra.mxu0 0.0
    %697 = vmatprep.subr.mxu0 0.0
    %698 = vmatpush1.msra.mxu0 0.0
    %699 = vmatprep.subr.mxu0 0.0
    %700 = vmatpush1.msra.mxu0 0.0
    %701 = vmatprep.subr.mxu0 0.0
    %702 = vmatpush1.msra.mxu0 %v668
    %703 = vmatprep.subr.mxu0 0.0
    %704 = vmatpush1.msra.mxu0 %v667
    %705 = vmatprep.subr.mxu0 0.0
    %706 = vmatpush1.msra.mxu0 %v666
    %707 = vmatprep.subr.mxu0 0.0
    %708 = vmatpush1.msra.mxu0 %v665
    %709 = vmatprep.subr.mxu0 0.0
    %710 = vmatpush1.msra.mxu0 %v664
    %711 = vmatprep.subr.mxu0 0.0
    %712 = vmatpush1.msra.mxu0 %v663
    %713 = vmatprep.subr.mxu0 0.0
    %714 = vmatpush1.msra.mxu0 %v662
    %715 = vmatprep.subr.mxu0 0.0
    %716 = vmatpush1.msra.mxu0 %v661
    %717 = vmatprep.subr.mxu0 0.0
    %718 = vmatpush2.msra.mxu0 0.0
    %719 = vmatprep.subr.mxu0 0.0
    %720 = vmatpush2.msra.mxu0 0.0
    %721 = vmatprep.subr.mxu0 0.0
    %722 = vmatpush2.msra.mxu0 0.0
    %723 = vmatprep.subr.mxu0 0.0
    %724 = vmatpush2.msra.mxu0 0.0
    %725 = vmatprep.subr.mxu0 0.0
    %726 = vmatpush2.msra.mxu0 0.0
    %727 = vmatprep.subr.mxu0 0.0
    %728 = vmatpush2.msra.mxu0 0.0
    %729 = vmatprep.subr.mxu0 0.0
    %730 = vmatpush2.msra.mxu0 0.0
    %731 = vmatprep.subr.mxu0 0.0
    %732 = vmatpush2.msra.mxu0 0.0
    %733 = vmatprep.subr.mxu0 0.0
    %734 = vmatpush2.msra.mxu0 0.0
    %735 = vmatprep.subr.mxu0 0.0
    %736 = vmatpush2.msra.mxu0 0.0
    %737 = vmatprep.subr.mxu0 0.0
    %738 = vmatpush2.msra.mxu0 0.0
    %739 = vmatprep.subr.mxu0 0.0
    %740 = vmatpush2.msra.mxu0 0.0
    %741 = vmatprep.subr.mxu0 0.0
    %742 = vmatpush2.msra.mxu0 0.0
    %743 = vmatprep.subr.mxu0 0.0
    %744 = vmatpush2.msra.mxu0 0.0
    %745 = vmatprep.subr.mxu0 0.0
    %746 = vmatpush2.msra.mxu0 0.0
    %747 = vmatprep.subr.mxu0 0.0
    %748 = vmatpush2.msra.mxu0 0.0
    %749 = vmatprep.mubr.f32.mxu0 0.0
    %750 = vmatmul.mubr.f32.gmra.mxu0 %v683
    %v751 = vpop.f32.mrf.mxu0
    %v752 = vadd.f32 %v680, %v751
    %v753 = vpop.f32.mrf.mxu0
    %754 = vdwg.mxu0
    %v755 = vsel %vm151, %v752, -1e+30
    %756 = vset.pattern.permute.xlu0 0
    %757 = vperm.xlu0 %756, %v675
    %v758 = vpop.permute.xlu0 %757
    %vm759 = vcmp.eq.s32.totalorder %v150, %v758
    %v760 = vsel %vm759, 1, 0
    %v761 = vcvt.s32.f32 %v760
    %762 = vmax.xlane.f32.xlu0 %v755
    %v763 = vpop.xlane.xlu0 %762
    %v764 = vsub.f32 %v755, %v763
    %v765 = vmul.f32 %v764, 1.442695
    %v766 = vpow.pop %v765
    %767 = vadd.xlane.f32.xlu0 %v766
    %v768 = vpop.xlane.xlu0 %767
    %v769 = vlog2.pop %v768
    %v770 = vmul.f32 %v769, 0.6931472
    %v771 = vsub.f32 %v764, %v770
    %v772 = vmul.f32 %v761, %v771
    %773 = vadd.xlane.f32.xlu0 %v772
    %v774 = vpop.xlane.xlu0 %773
    %v775 = vsub.f32 0.0, %v774
    %v776 = vrot.slane %v775, 4
    %v777 = vadd.f32 %v775, %v776
    %v778 = vrot.slane %v777, 2
    %v779 = vadd.f32 %v777, %v778
    %v780 = vrot.slane %v779, 1
    %v781 = vadd.f32 %v779, %v780
    %v782 = vmul.f32 %v781, 0.125
    %v783 = vrcp.pop %v768
    %v784 = vmul.f32 %v766, %v783
    %v785 = vsub.f32 %v784, %v761
    %v786 = vmul.f32 %v785, 0.125
    %787 = vxpose.xlu0.b32.start [1/16] %v673, 128
    %788 = vxpose.xlu0.b32.cont [2/16] 0.0, 128
    %789 = vxpose.xlu0.b32.cont [3/16] 0.0, 128
    %790 = vxpose.xlu0.b32.cont [4/16] 0.0, 128
    %791 = vxpose.xlu0.b32.cont [5/16] 0.0, 128
    %792 = vxpose.xlu0.b32.cont [6/16] 0.0, 128
    %793 = vxpose.xlu0.b32.cont [7/16] 0.0, 128
    %794 = vxpose.xlu0.b32.cont [8/16] 0.0, 128
    %795 = vxpose.xlu0.b32.cont [9/16] 0.0, 128
    %796 = vxpose.xlu0.b32.cont [10/16] 0.0, 128
    %797 = vxpose.xlu0.b32.cont [11/16] 0.0, 128
    %798 = vxpose.xlu0.b32.cont [12/16] 0.0, 128
    %799 = vxpose.xlu0.b32.cont [13/16] 0.0, 128
    %800 = vxpose.xlu0.b32.cont [14/16] 0.0, 128
    %801 = vxpose.xlu0.b32.cont [15/16] 0.0, 128
    %802 = vxpose.xlu0.b32.end [16/16] 0.0, 128
    %v803 = vpop.trf.xlu0
    %v804 = vpop.trf.xlu0
    %v805 = vpop.trf.xlu0
    %v806 = vpop.trf.xlu0
    %v807 = vpop.trf.xlu0
    %v808 = vpop.trf.xlu0
    %v809 = vpop.trf.xlu0
    %v810 = vpop.trf.xlu0
    %v811 = vpop.trf.xlu0
    %v812 = vpop.trf.xlu0
    %v813 = vpop.trf.xlu0
    %v814 = vpop.trf.xlu0
    %v815 = vpop.trf.xlu0
    %v816 = vpop.trf.xlu0
    %v817 = vpop.trf.xlu0
    %v818 = vpop.trf.xlu0
    %v820 = vsel %vm216, %v803, 0
    %v823 = vsel %vm216, %v804, 0
    %v826 = vsel %vm216, %v805, 0
    %v829 = vsel %vm216, %v806, 0
    %v832 = vsel %vm216, %v807, 0
    %v835 = vsel %vm216, %v808, 0
    %v838 = vsel %vm216, %v809, 0
    %v841 = vsel %vm216, %v810, 0
    %843 = vmatprep.subr.mxu0 0.0
    %844 = vmatpush1.msra.mxu0 0.0
    %845 = vmatprep.subr.mxu0 0.0
    %846 = vmatpush1.msra.mxu0 0.0
    %847 = vmatprep.subr.mxu0 0.0
    %848 = vmatpush1.msra.mxu0 0.0
    %849 = vmatprep.subr.mxu0 0.0
    %850 = vmatpush1.msra.mxu0 0.0
    %851 = vmatprep.subr.mxu0 0.0
    %852 = vmatpush1.msra.mxu0 0.0
    %853 = vmatprep.subr.mxu0 0.0
    %854 = vmatpush1.msra.mxu0 0.0
    %855 = vmatprep.subr.mxu0 0.0
    %856 = vmatpush1.msra.mxu0 0.0
    %857 = vmatprep.subr.mxu0 0.0
    %858 = vmatpush1.msra.mxu0 0.0
    %859 = vmatprep.subr.mxu0 0.0
    %860 = vmatpush1.msra.mxu0 0.0
    %861 = vmatprep.subr.mxu0 0.0
    %862 = vmatpush1.msra.mxu0 0.0
    %863 = vmatprep.subr.mxu0 0.0
    %864 = vmatpush1.msra.mxu0 0.0
    %865 = vmatprep.subr.mxu0 0.0
    %866 = vmatpush1.msra.mxu0 0.0
    %867 = vmatprep.subr.mxu0 0.0
    %868 = vmatpush1.msra.mxu0 0.0
    %869 = vmatprep.subr.mxu0 0.0
    %870 = vmatpush1.msra.mxu0 0.0
    %871 = vmatprep.subr.mxu0 0.0
    %872 = vmatpush1.msra.mxu0 0.0
    %873 = vmatprep.subr.mxu0 0.0
    %874 = vmatpush1.msra.mxu0 %v786
    %875 = vmatprep.subr.mxu0 0.0
    %876 = vmatpush2.msra.mxu0 0.0
    %877 = vmatprep.subr.mxu0 0.0
    %878 = vmatpush2.msra.mxu0 0.0
    %879 = vmatprep.subr.mxu0 0.0
    %880 = vmatpush2.msra.mxu0 0.0
    %881 = vmatprep.subr.mxu0 0.0
    %882 = vmatpush2.msra.mxu0 0.0
    %883 = vmatprep.subr.mxu0 0.0
    %884 = vmatpush2.msra.mxu0 0.0
    %885 = vmatprep.subr.mxu0 0.0
    %886 = vmatpush2.msra.mxu0 0.0
    %887 = vmatprep.subr.mxu0 0.0
    %888 = vmatpush2.msra.mxu0 0.0
    %889 = vmatprep.subr.mxu0 0.0
    %890 = vmatpush2.msra.mxu0 0.0
    %891 = vmatprep.subr.mxu0 0.0
    %892 = vmatpush2.msra.mxu0 0.0
    %893 = vmatprep.subr.mxu0 0.0
    %894 = vmatpush2.msra.mxu0 0.0
    %895 = vmatprep.subr.mxu0 0.0
    %896 = vmatpush2.msra.mxu0 0.0
    %897 = vmatprep.subr.mxu0 0.0
    %898 = vmatpush2.msra.mxu0 0.0
    %899 = vmatprep.subr.mxu0 0.0
    %900 = vmatpush2.msra.mxu0 0.0
    %901 = vmatprep.subr.mxu0 0.0
    %902 = vmatpush2.msra.mxu0 0.0
    %903 = vmatprep.subr.mxu0 0.0
    %904 = vmatpush2.msra.mxu0 0.0
    %905 = vmatprep.subr.mxu0 0.0
    %906 = vmatpush2.msra.mxu0 0.0
    %907 = vmatprep.mubr.f32.mxu0 0.0
    %908 = vmatmul.mubr.f32.gmra.mxu0 %v820
    %v909 = vpop.f32.mrf.mxu0
    %v910 = vadd.f32 0.0, %v909
    %v911 = vpop.f32.mrf.mxu0
    %912 = vmatprep.mubr.f32.mxu0 0.0
    %913 = vmatmul.mubr.f32.gmra.mxu0 %v823
    %v914 = vpop.f32.mrf.mxu0
    %v915 = vadd.f32 0.0, %v914
    %v916 = vpop.f32.mrf.mxu0
    %917 = vmatprep.mubr.f32.mxu0 0.0
    %918 = vmatmul.mubr.f32.gmra.mxu0 %v826
    %v919 = vpop.f32.mrf.mxu0
    %v920 = vadd.f32 0.0, %v919
    %v921 = vpop.f32.mrf.mxu0
    %922 = vmatprep.mubr.f32.mxu0 0.0
    %923 = vmatmul.mubr.f32.gmra.mxu0 %v829
    %v924 = vpop.f32.mrf.mxu0
    %v925 = vadd.f32 0.0, %v924
    %v926 = vpop.f32.mrf.mxu0
    %927 = vmatprep.mubr.f32.mxu0 0.0
    %928 = vmatmul.mubr.f32.gmra.mxu0 %v832
    %v929 = vpop.f32.mrf.mxu0
    %v930 = vadd.f32 0.0, %v929
    %v931 = vpop.f32.mrf.mxu0
    %932 = vmatprep.mubr.f32.mxu0 0.0
    %933 = vmatmul.mubr.f32.gmra.mxu0 %v835
    %v934 = vpop.f32.mrf.mxu0
    %v935 = vadd.f32 0.0, %v934
    %v936 = vpop.f32.mrf.mxu0
    %937 = vmatprep.mubr.f32.mxu0 0.0
    %938 = vmatmul.mubr.f32.gmra.mxu0 %v838
    %v939 = vpop.f32.mrf.mxu0
    %v940 = vadd.f32 0.0, %v939
    %v941 = vpop.f32.mrf.mxu0
    %942 = vmatprep.mubr.f32.mxu0 0.0
    %943 = vmatmul.mubr.f32.gmra.mxu0 %v841
    %v944 = vpop.f32.mrf.mxu0
    %v945 = vadd.f32 0.0, %v944
    %v946 = vpop.f32.mrf.mxu0
    %947 = vdwg.mxu0
    %v948 = vrot.slane %v786, 4
    %v949 = vadd.f32 %v786, %v948
    %v950 = vrot.slane %v949, 2
    %v951 = vadd.f32 %v949, %v950
    %v952 = vrot.slane %v951, 1
    %v953 = vadd.f32 %v951, %v952
    %v954 = vmul.f32 %v910, 0.1
    %v955 = vmul.f32 %v915, 0.1
    %v956 = vmul.f32 %v920, 0.1
    %v957 = vmul.f32 %v925, 0.1
    %v958 = vmul.f32 %v930, 0.1
    %v959 = vmul.f32 %v935, 0.1
    %v960 = vmul.f32 %v940, 0.1
    %v961 = vmul.f32 %v945, 0.1
    %v962 = vsub.f32 %v661, %v954
    %v963 = vsub.f32 %v662, %v955
    %v964 = vsub.f32 %v663, %v956
    %v965 = vsub.f32 %v664, %v957
    %v966 = vsub.f32 %v665, %v958
    %v967 = vsub.f32 %v666, %v959
    %v968 = vsub.f32 %v667, %v960
    %v969 = vsub.f32 %v668, %v961
    %v970 = vmul.f32 %v953, 0.1
    %v971 = vsub.f32 %v670, %v970
    %v972 = vadd.f32 %v671, %v782
    %vm973 = vcmp.eq.s32.totalorder %v66, 0
    %v974 = vsel %vm973, %v972, 0.0
    %v976 = vlaneseq
    %v977 = vshrl.u32 %v976, 7
    %v978 = vsub.s32 0, %v977
    %v979 = vrot.slane %v971, %v978
    %981 = vmatprep.subr.mxu0 0.0
    %982 = vmatpush1.msra.mxu0 0.0
    %983 = vmatprep.subr.mxu0 0.0
    %984 = vmatpush1.msra.mxu0 0.0
    %985 = vmatprep.subr.mxu0 0.0
    %986 = vmatpush1.msra.mxu0 0.0
    %987 = vmatprep.subr.mxu0 0.0
    %988 = vmatpush1.msra.mxu0 0.0
    %989 = vmatprep.subr.mxu0 0.0
    %990 = vmatpush1.msra.mxu0 0.0
    %991 = vmatprep.subr.mxu0 0.0
    %992 = vmatpush1.msra.mxu0 0.0
    %993 = vmatprep.subr.mxu0 0.0
    %994 = vmatpush1.msra.mxu0 0.0
    %995 = vmatprep.subr.mxu0 0.0
    %996 = vmatpush1.msra.mxu0 0.0
    %997 = vmatprep.subr.mxu0 0.0
    %998 = vmatpush1.msra.mxu0 %v969
    %999 = vmatprep.subr.mxu0 0.0
    %1000 = vmatpush1.msra.mxu0 %v968
    %1001 = vmatprep.subr.mxu0 0.0
    %1002 = vmatpush1.msra.mxu0 %v967
    %1003 = vmatprep.subr.mxu0 0.0
    %1004 = vmatpush1.msra.mxu0 %v966
    %1005 = vmatprep.subr.mxu0 0.0
    %1006 = vmatpush1.msra.mxu0 %v965
    %1007 = vmatprep.subr.mxu0 0.0
    %1008 = vmatpush1.msra.mxu0 %v964
    %1009 = vmatprep.subr.mxu0 0.0
    %1010 = vmatpush1.msra.mxu0 %v963
    %1011 = vmatprep.subr.mxu0 0.0
    %1012 = vmatpush1.msra.mxu0 %v962
    %1013 = vmatprep.subr.mxu0 0.0
    %1014 = vmatpush2.msra.mxu0 0.0
    %1015 = vmatprep.subr.mxu0 0.0
    %1016 = vmatpush2.msra.mxu0 0.0
    %1017 = vmatprep.subr.mxu0 0.0
    %1018 = vmatpush2.msra.mxu0 0.0
    %1019 = vmatprep.subr.mxu0 0.0
    %1020 = vmatpush2.msra.mxu0 0.0
    %1021 = vmatprep.subr.mxu0 0.0
    %1022 = vmatpush2.msra.mxu0 0.0
    %1023 = vmatprep.subr.mxu0 0.0
    %1024 = vmatpush2.msra.mxu0 0.0
    %1025 = vmatprep.subr.mxu0 0.0
    %1026 = vmatpush2.msra.mxu0 0.0
    %1027 = vmatprep.subr.mxu0 0.0
    %1028 = vmatpush2.msra.mxu0 0.0
    %1029 = vmatprep.subr.mxu0 0.0
    %1030 = vmatpush2.msra.mxu0 0.0
    %1031 = vmatprep.subr.mxu0 0.0
    %1032 = vmatpush2.msra.mxu0 0.0
    %1033 = vmatprep.subr.mxu0 0.0
    %1034 = vmatpush2.msra.mxu0 0.0
    %1035 = vmatprep.subr.mxu0 0.0
    %1036 = vmatpush2.msra.mxu0 0.0
    %1037 = vmatprep.subr.mxu0 0.0
    %1038 = vmatpush2.msra.mxu0 0.0
    %1039 = vmatprep.subr.mxu0 0.0
    %1040 = vmatpush2.msra.mxu0 0.0
    %1041 = vmatprep.subr.mxu0 0.0
    %1042 = vmatpush2.msra.mxu0 0.0
    %1043 = vmatprep.subr.mxu0 0.0
    %1044 = vmatpush2.msra.mxu0 0.0
    %1045 = vmatprep.mubr.f32.mxu0 0.0
    %1046 = vmatmul.mubr.f32.gmra.mxu0 %v77
    %v1047 = vpop.f32.mrf.mxu0
    %v1048 = vadd.f32 %v979, %v1047
    %v1049 = vpop.f32.mrf.mxu0
    %1050 = vdwg.mxu0
    %v1051 = vsel %vm151, %v1048, -1e+30
    %1052 = vmax.xlane.f32.xlu0 %v1051
    %v1053 = vpop.xlane.xlu0 %1052
    %v1054 = vsub.f32 %v1051, %v1053
    %v1055 = vmul.f32 %v1054, 1.442695
    %v1056 = vpow.pop %v1055
    %1057 = vadd.xlane.f32.xlu0 %v1056
    %v1058 = vpop.xlane.xlu0 %1057
    %v1059 = vlog2.pop %v1058
    %v1060 = vmul.f32 %v1059, 0.6931472
    %v1061 = vsub.f32 %v1054, %v1060
    %v1062 = vmul.f32 %v158, %v1061
    %1063 = vadd.xlane.f32.xlu0 %v1062
    %v1064 = vpop.xlane.xlu0 %1063
    %v1065 = vsub.f32 0.0, %v1064
    %v1066 = vrot.slane %v1065, 4
    %v1067 = vadd.f32 %v1065, %v1066
    %v1068 = vrot.slane %v1067, 2
    %v1069 = vadd.f32 %v1067, %v1068
    %v1070 = vrot.slane %v1069, 1
    %v1071 = vadd.f32 %v1069, %v1070
    %v1072 = vmul.f32 %v1071, 0.125
    %v1073 = vrcp.pop %v1058
    %v1074 = vmul.f32 %v1056, %v1073
    %v1075 = vsub.f32 %v1074, %v158
    %v1076 = vmul.f32 %v1075, 0.125
    %1077 = vmatprep.subr.mxu0 0.0
    %1078 = vmatpush1.msra.mxu0 0.0
    %1079 = vmatprep.subr.mxu0 0.0
    %1080 = vmatpush1.msra.mxu0 0.0
    %1081 = vmatprep.subr.mxu0 0.0
    %1082 = vmatpush1.msra.mxu0 0.0
    %1083 = vmatprep.subr.mxu0 0.0
    %1084 = vmatpush1.msra.mxu0 0.0
    %1085 = vmatprep.subr.mxu0 0.0
    %1086 = vmatpush1.msra.mxu0 0.0
    %1087 = vmatprep.subr.mxu0 0.0
    %1088 = vmatpush1.msra.mxu0 0.0
    %1089 = vmatprep.subr.mxu0 0.0
    %1090 = vmatpush1.msra.mxu0 0.0
    %1091 = vmatprep.subr.mxu0 0.0
    %1092 = vmatpush1.msra.mxu0 0.0
    %1093 = vmatprep.subr.mxu0 0.0
    %1094 = vmatpush1.msra.mxu0 0.0
    %1095 = vmatprep.subr.mxu0 0.0
    %1096 = vmatpush1.msra.mxu0 0.0
    %1097 = vmatprep.subr.mxu0 0.0
    %1098 = vmatpush1.msra.mxu0 0.0
    %1099 = vmatprep.subr.mxu0 0.0
    %1100 = vmatpush1.msra.mxu0 0.0
    %1101 = vmatprep.subr.mxu0 0.0
    %1102 = vmatpush1.msra.mxu0 0.0
    %1103 = vmatprep.subr.mxu0 0.0
    %1104 = vmatpush1.msra.mxu0 0.0
    %1105 = vmatprep.subr.mxu0 0.0
    %1106 = vmatpush1.msra.mxu0 0.0
    %1107 = vmatprep.subr.mxu0 0.0
    %1108 = vmatpush1.msra.mxu0 %v1076
    %1109 = vmatprep.subr.mxu0 0.0
    %1110 = vmatpush2.msra.mxu0 0.0
    %1111 = vmatprep.subr.mxu0 0.0
    %1112 = vmatpush2.msra.mxu0 0.0
    %1113 = vmatprep.subr.mxu0 0.0
    %1114 = vmatpush2.msra.mxu0 0.0
    %1115 = vmatprep.subr.mxu0 0.0
    %1116 = vmatpush2.msra.mxu0 0.0
    %1117 = vmatprep.subr.mxu0 0.0
    %1118 = vmatpush2.msra.mxu0 0.0
    %1119 = vmatprep.subr.mxu0 0.0
    %1120 = vmatpush2.msra.mxu0 0.0
    %1121 = vmatprep.subr.mxu0 0.0
    %1122 = vmatpush2.msra.mxu0 0.0
    %1123 = vmatprep.subr.mxu0 0.0
    %1124 = vmatpush2.msra.mxu0 0.0
    %1125 = vmatprep.subr.mxu0 0.0
    %1126 = vmatpush2.msra.mxu0 0.0
    %1127 = vmatprep.subr.mxu0 0.0
    %1128 = vmatpush2.msra.mxu0 0.0
    %1129 = vmatprep.subr.mxu0 0.0
    %1130 = vmatpush2.msra.mxu0 0.0
    %1131 = vmatprep.subr.mxu0 0.0
    %1132 = vmatpush2.msra.mxu0 0.0
    %1133 = vmatprep.subr.mxu0 0.0
    %1134 = vmatpush2.msra.mxu0 0.0
    %1135 = vmatprep.subr.mxu0 0.0
    %1136 = vmatpush2.msra.mxu0 0.0
    %1137 = vmatprep.subr.mxu0 0.0
    %1138 = vmatpush2.msra.mxu0 0.0
    %1139 = vmatprep.subr.mxu0 0.0
    %1140 = vmatpush2.msra.mxu0 0.0
    %1141 = vmatprep.mubr.f32.mxu0 0.0
    %1142 = vmatmul.mubr.f32.gmra.mxu0 %v218
    %v1143 = vpop.f32.mrf.mxu0
    %v1144 = vadd.f32 0.0, %v1143
    %v1145 = vpop.f32.mrf.mxu0
    %1146 = vmatprep.mubr.f32.mxu0 0.0
    %1147 = vmatmul.mubr.f32.gmra.mxu0 %v221
    %v1148 = vpop.f32.mrf.mxu0
    %v1149 = vadd.f32 0.0, %v1148
    %v1150 = vpop.f32.mrf.mxu0
    %1151 = vmatprep.mubr.f32.mxu0 0.0
    %1152 = vmatmul.mubr.f32.gmra.mxu0 %v224
    %v1153 = vpop.f32.mrf.mxu0
    %v1154 = vadd.f32 0.0, %v1153
    %v1155 = vpop.f32.mrf.mxu0
    %1156 = vmatprep.mubr.f32.mxu0 0.0
    %1157 = vmatmul.mubr.f32.gmra.mxu0 %v227
    %v1158 = vpop.f32.mrf.mxu0
    %v1159 = vadd.f32 0.0, %v1158
    %v1160 = vpop.f32.mrf.mxu0
    %1161 = vmatprep.mubr.f32.mxu0 0.0
    %1162 = vmatmul.mubr.f32.gmra.mxu0 %v230
    %v1163 = vpop.f32.mrf.mxu0
    %v1164 = vadd.f32 0.0, %v1163
    %v1165 = vpop.f32.mrf.mxu0
    %1166 = vmatprep.mubr.f32.mxu0 0.0
    %1167 = vmatmul.mubr.f32.gmra.mxu0 %v233
    %v1168 = vpop.f32.mrf.mxu0
    %v1169 = vadd.f32 0.0, %v1168
    %v1170 = vpop.f32.mrf.mxu0
    %1171 = vmatprep.mubr.f32.mxu0 0.0
    %1172 = vmatmul.mubr.f32.gmra.mxu0 %v236
    %v1173 = vpop.f32.mrf.mxu0
    %v1174 = vadd.f32 0.0, %v1173
    %v1175 = vpop.f32.mrf.mxu0
    %1176 = vmatprep.mubr.f32.mxu0 0.0
    %1177 = vmatmul.mubr.f32.gmra.mxu0 %v239
    %v1178 = vpop.f32.mrf.mxu0
    %v1179 = vadd.f32 0.0, %v1178
    %v1180 = vpop.f32.mrf.mxu0
    %1181 = vdwg.mxu0
    %v1182 = vrot.slane %v1076, 4
    %v1183 = vadd.f32 %v1076, %v1182
    %v1184 = vrot.slane %v1183, 2
    %v1185 = vadd.f32 %v1183, %v1184
    %v1186 = vrot.slane %v1185, 1
    %v1187 = vadd.f32 %v1185, %v1186
    %v1188 = vmul.f32 %v1144, 0.1
    %v1189 = vmul.f32 %v1149, 0.1
    %v1190 = vmul.f32 %v1154, 0.1
    %v1191 = vmul.f32 %v1159, 0.1
    %v1192 = vmul.f32 %v1164, 0.1
    %v1193 = vmul.f32 %v1169, 0.1
    %v1194 = vmul.f32 %v1174, 0.1
    %v1195 = vmul.f32 %v1179, 0.1
    %v1196 = vsub.f32 %v962, %v1188
    %v1197 = vsub.f32 %v963, %v1189
    %v1198 = vsub.f32 %v964, %v1190
    %v1199 = vsub.f32 %v965, %v1191
    %v1200 = vsub.f32 %v966, %v1192
    %v1201 = vsub.f32 %v967, %v1193
    %v1202 = vsub.f32 %v968, %v1194
    %v1203 = vsub.f32 %v969, %v1195
    %v1204 = vmul.f32 %v1187, 0.1
    %v1205 = vsub.f32 %v971, %v1204
    %v1206 = vadd.f32 %v1072, 0.0
    %v1208 = vlaneseq
    %v1209 = vshrl.u32 %v1208, 7
    %v1210 = vsub.s32 0, %v1209
    %v1211 = vrot.slane %v1205, %v1210
    %1213 = vmatprep.subr.mxu0 0.0
    %1214 = vmatpush1.msra.mxu0 0.0
    %1215 = vmatprep.subr.mxu0 0.0
    %1216 = vmatpush1.msra.mxu0 0.0
    %1217 = vmatprep.subr.mxu0 0.0
    %1218 = vmatpush1.msra.mxu0 0.0
    %1219 = vmatprep.subr.mxu0 0.0
    %1220 = vmatpush1.msra.mxu0 0.0
    %1221 = vmatprep.subr.mxu0 0.0
    %1222 = vmatpush1.msra.mxu0 0.0
    %1223 = vmatprep.subr.mxu0 0.0
    %1224 = vmatpush1.msra.mxu0 0.0
    %1225 = vmatprep.subr.mxu0 0.0
    %1226 = vmatpush1.msra.mxu0 0.0
    %1227 = vmatprep.subr.mxu0 0.0
    %1228 = vmatpush1.msra.mxu0 0.0
    %1229 = vmatprep.subr.mxu0 0.0
    %1230 = vmatpush1.msra.mxu0 %v1203
    %1231 = vmatprep.subr.mxu0 0.0
    %1232 = vmatpush1.msra.mxu0 %v1202
    %1233 = vmatprep.subr.mxu0 0.0
    %1234 = vmatpush1.msra.mxu0 %v1201
    %1235 = vmatprep.subr.mxu0 0.0
    %1236 = vmatpush1.msra.mxu0 %v1200
    %1237 = vmatprep.subr.mxu0 0.0
    %1238 = vmatpush1.msra.mxu0 %v1199
    %1239 = vmatprep.subr.mxu0 0.0
    %1240 = vmatpush1.msra.mxu0 %v1198
    %1241 = vmatprep.subr.mxu0 0.0
    %1242 = vmatpush1.msra.mxu0 %v1197
    %1243 = vmatprep.subr.mxu0 0.0
    %1244 = vmatpush1.msra.mxu0 %v1196
    %1245 = vmatprep.subr.mxu0 0.0
    %1246 = vmatpush2.msra.mxu0 0.0
    %1247 = vmatprep.subr.mxu0 0.0
    %1248 = vmatpush2.msra.mxu0 0.0
    %1249 = vmatprep.subr.mxu0 0.0
    %1250 = vmatpush2.msra.mxu0 0.0
    %1251 = vmatprep.subr.mxu0 0.0
    %1252 = vmatpush2.msra.mxu0 0.0
    %1253 = vmatprep.subr.mxu0 0.0
    %1254 = vmatpush2.msra.mxu0 0.0
    %1255 = vmatprep.subr.mxu0 0.0
    %1256 = vmatpush2.msra.mxu0 0.0
    %1257 = vmatprep.subr.mxu0 0.0
    %1258 = vmatpush2.msra.mxu0 0.0
    %1259 = vmatprep.subr.mxu0 0.0
    %1260 = vmatpush2.msra.mxu0 0.0
    %1261 = vmatprep.subr.mxu0 0.0
    %1262 = vmatpush2.msra.mxu0 0.0
    %1263 = vmatprep.subr.mxu0 0.0
    %1264 = vmatpush2.msra.mxu0 0.0
    %1265 = vmatprep.subr.mxu0 0.0
    %1266 = vmatpush2.msra.mxu0 0.0
    %1267 = vmatprep.subr.mxu0 0.0
    %1268 = vmatpush2.msra.mxu0 0.0
    %1269 = vmatprep.subr.mxu0 0.0
    %1270 = vmatpush2.msra.mxu0 0.0
    %1271 = vmatprep.subr.mxu0 0.0
    %1272 = vmatpush2.msra.mxu0 0.0
    %1273 = vmatprep.subr.mxu0 0.0
    %1274 = vmatpush2.msra.mxu0 0.0
    %1275 = vmatprep.subr.mxu0 0.0
    %1276 = vmatpush2.msra.mxu0 0.0
    %1277 = vmatprep.mubr.f32.mxu0 0.0
    %1278 = vmatmul.mubr.f32.gmra.mxu0 %v382
    %v1279 = vpop.f32.mrf.mxu0
    %v1280 = vadd.f32 %v1211, %v1279
    %v1281 = vpop.f32.mrf.mxu0
    %1282 = vdwg.mxu0
    %v1283 = vsel %vm151, %v1280, -1e+30
    %1284 = vmax.xlane.f32.xlu0 %v1283
    %v1285 = vpop.xlane.xlu0 %1284
    %v1286 = vsub.f32 %v1283, %v1285
    %v1287 = vmul.f32 %v1286, 1.442695
    %v1288 = vpow.pop %v1287
    %1289 = vadd.xlane.f32.xlu0 %v1288
    %v1290 = vpop.xlane.xlu0 %1289
    %v1291 = vlog2.pop %v1290
    %v1292 = vmul.f32 %v1291, 0.6931472
    %v1293 = vsub.f32 %v1286, %v1292
    %v1294 = vmul.f32 %v460, %v1293
    %1295 = vadd.xlane.f32.xlu0 %v1294
    %v1296 = vpop.xlane.xlu0 %1295
    %v1297 = vsub.f32 0.0, %v1296
    %v1298 = vrot.slane %v1297, 4
    %v1299 = vadd.f32 %v1297, %v1298
    %v1300 = vrot.slane %v1299, 2
    %v1301 = vadd.f32 %v1299, %v1300
    %v1302 = vrot.slane %v1301, 1
    %v1303 = vadd.f32 %v1301, %v1302
    %v1304 = vmul.f32 %v1303, 0.125
    %v1305 = vrcp.pop %v1290
    %v1306 = vmul.f32 %v1288, %v1305
    %v1307 = vsub.f32 %v1306, %v460
    %v1308 = vmul.f32 %v1307, 0.125
    %1309 = vmatprep.subr.mxu0 0.0
    %1310 = vmatpush1.msra.mxu0 0.0
    %1311 = vmatprep.subr.mxu0 0.0
    %1312 = vmatpush1.msra.mxu0 0.0
    %1313 = vmatprep.subr.mxu0 0.0
    %1314 = vmatpush1.msra.mxu0 0.0
    %1315 = vmatprep.subr.mxu0 0.0
    %1316 = vmatpush1.msra.mxu0 0.0
    %1317 = vmatprep.subr.mxu0 0.0
    %1318 = vmatpush1.msra.mxu0 0.0
    %1319 = vmatprep.subr.mxu0 0.0
    %1320 = vmatpush1.msra.mxu0 0.0
    %1321 = vmatprep.subr.mxu0 0.0
    %1322 = vmatpush1.msra.mxu0 0.0
    %1323 = vmatprep.subr.mxu0 0.0
    %1324 = vmatpush1.msra.mxu0 0.0
    %1325 = vmatprep.subr.mxu0 0.0
    %1326 = vmatpush1.msra.mxu0 0.0
    %1327 = vmatprep.subr.mxu0 0.0
    %1328 = vmatpush1.msra.mxu0 0.0
    %1329 = vmatprep.subr.mxu0 0.0
    %1330 = vmatpush1.msra.mxu0 0.0
    %1331 = vmatprep.subr.mxu0 0.0
    %1332 = vmatpush1.msra.mxu0 0.0
    %1333 = vmatprep.subr.mxu0 0.0
    %1334 = vmatpush1.msra.mxu0 0.0
    %1335 = vmatprep.subr.mxu0 0.0
    %1336 = vmatpush1.msra.mxu0 0.0
    %1337 = vmatprep.subr.mxu0 0.0
    %1338 = vmatpush1.msra.mxu0 0.0
    %1339 = vmatprep.subr.mxu0 0.0
    %1340 = vmatpush1.msra.mxu0 %v1308
    %1341 = vmatprep.subr.mxu0 0.0
    %1342 = vmatpush2.msra.mxu0 0.0
    %1343 = vmatprep.subr.mxu0 0.0
    %1344 = vmatpush2.msra.mxu0 0.0
    %1345 = vmatprep.subr.mxu0 0.0
    %1346 = vmatpush2.msra.mxu0 0.0
    %1347 = vmatprep.subr.mxu0 0.0
    %1348 = vmatpush2.msra.mxu0 0.0
    %1349 = vmatprep.subr.mxu0 0.0
    %1350 = vmatpush2.msra.mxu0 0.0
    %1351 = vmatprep.subr.mxu0 0.0
    %1352 = vmatpush2.msra.mxu0 0.0
    %1353 = vmatprep.subr.mxu0 0.0
    %1354 = vmatpush2.msra.mxu0 0.0
    %1355 = vmatprep.subr.mxu0 0.0
    %1356 = vmatpush2.msra.mxu0 0.0
    %1357 = vmatprep.subr.mxu0 0.0
    %1358 = vmatpush2.msra.mxu0 0.0
    %1359 = vmatprep.subr.mxu0 0.0
    %1360 = vmatpush2.msra.mxu0 0.0
    %1361 = vmatprep.subr.mxu0 0.0
    %1362 = vmatpush2.msra.mxu0 0.0
    %1363 = vmatprep.subr.mxu0 0.0
    %1364 = vmatpush2.msra.mxu0 0.0
    %1365 = vmatprep.subr.mxu0 0.0
    %1366 = vmatpush2.msra.mxu0 0.0
    %1367 = vmatprep.subr.mxu0 0.0
    %1368 = vmatpush2.msra.mxu0 0.0
    %1369 = vmatprep.subr.mxu0 0.0
    %1370 = vmatpush2.msra.mxu0 0.0
    %1371 = vmatprep.subr.mxu0 0.0
    %1372 = vmatpush2.msra.mxu0 0.0
    %1373 = vmatprep.mubr.f32.mxu0 0.0
    %1374 = vmatmul.mubr.f32.gmra.mxu0 %v519
    %v1375 = vpop.f32.mrf.mxu0
    %v1376 = vadd.f32 0.0, %v1375
    %v1377 = vpop.f32.mrf.mxu0
    %1378 = vmatprep.mubr.f32.mxu0 0.0
    %1379 = vmatmul.mubr.f32.gmra.mxu0 %v522
    %v1380 = vpop.f32.mrf.mxu0
    %v1381 = vadd.f32 0.0, %v1380
    %v1382 = vpop.f32.mrf.mxu0
    %1383 = vmatprep.mubr.f32.mxu0 0.0
    %1384 = vmatmul.mubr.f32.gmra.mxu0 %v525
    %v1385 = vpop.f32.mrf.mxu0
    %v1386 = vadd.f32 0.0, %v1385
    %v1387 = vpop.f32.mrf.mxu0
    %1388 = vmatprep.mubr.f32.mxu0 0.0
    %1389 = vmatmul.mubr.f32.gmra.mxu0 %v528
    %v1390 = vpop.f32.mrf.mxu0
    %v1391 = vadd.f32 0.0, %v1390
    %v1392 = vpop.f32.mrf.mxu0
    %1393 = vmatprep.mubr.f32.mxu0 0.0
    %1394 = vmatmul.mubr.f32.gmra.mxu0 %v531
    %v1395 = vpop.f32.mrf.mxu0
    %v1396 = vadd.f32 0.0, %v1395
    %v1397 = vpop.f32.mrf.mxu0
    %1398 = vmatprep.mubr.f32.mxu0 0.0
    %1399 = vmatmul.mubr.f32.gmra.mxu0 %v534
    %v1400 = vpop.f32.mrf.mxu0
    %v1401 = vadd.f32 0.0, %v1400
    %v1402 = vpop.f32.mrf.mxu0
    %1403 = vmatprep.mubr.f32.mxu0 0.0
    %1404 = vmatmul.mubr.f32.gmra.mxu0 %v537
    %v1405 = vpop.f32.mrf.mxu0
    %v1406 = vadd.f32 0.0, %v1405
    %v1407 = vpop.f32.mrf.mxu0
    %1408 = vmatprep.mubr.f32.mxu0 0.0
    %1409 = vmatmul.mubr.f32.gmra.mxu0 %v540
    %v1410 = vpop.f32.mrf.mxu0
    %v1411 = vadd.f32 0.0, %v1410
    %v1412 = vpop.f32.mrf.mxu0
    %1413 = vdwg.mxu0
    %v1414 = vrot.slane %v1308, 4
    %v1415 = vadd.f32 %v1308, %v1414
    %v1416 = vrot.slane %v1415, 2
    %v1417 = vadd.f32 %v1415, %v1416
    %v1418 = vrot.slane %v1417, 1
    %v1419 = vadd.f32 %v1417, %v1418
    %v1420 = vmul.f32 %v1376, 0.1
    %v1421 = vmul.f32 %v1381, 0.1
    %v1422 = vmul.f32 %v1386, 0.1
    %v1423 = vmul.f32 %v1391, 0.1
    %v1424 = vmul.f32 %v1396, 0.1
    %v1425 = vmul.f32 %v1401, 0.1
    %v1426 = vmul.f32 %v1406, 0.1
    %v1427 = vmul.f32 %v1411, 0.1
    %v1428 = vsub.f32 %v1196, %v1420
    %v1429 = vsub.f32 %v1197, %v1421
    %v1430 = vsub.f32 %v1198, %v1422
    %v1431 = vsub.f32 %v1199, %v1423
    %v1432 = vsub.f32 %v1200, %v1424
    %v1433 = vsub.f32 %v1201, %v1425
    %v1434 = vsub.f32 %v1202, %v1426
    %v1435 = vsub.f32 %v1203, %v1427
    %v1436 = vmul.f32 %v1419, 0.1
    %v1437 = vsub.f32 %v1205, %v1436
    %v1438 = vadd.f32 %v1206, %v1304
    %v1440 = vlaneseq
    %v1441 = vshrl.u32 %v1440, 7
    %v1442 = vsub.s32 0, %v1441
    %v1443 = vrot.slane %v1437, %v1442
    %1445 = vmatprep.subr.mxu0 0.0
    %1446 = vmatpush1.msra.mxu0 0.0
    %1447 = vmatprep.subr.mxu0 0.0
    %1448 = vmatpush1.msra.mxu0 0.0
    %1449 = vmatprep.subr.mxu0 0.0
    %1450 = vmatpush1.msra.mxu0 0.0
    %1451 = vmatprep.subr.mxu0 0.0
    %1452 = vmatpush1.msra.mxu0 0.0
    %1453 = vmatprep.subr.mxu0 0.0
    %1454 = vmatpush1.msra.mxu0 0.0
    %1455 = vmatprep.subr.mxu0 0.0
    %1456 = vmatpush1.msra.mxu0 0.0
    %1457 = vmatprep.subr.mxu0 0.0
    %1458 = vmatpush1.msra.mxu0 0.0
    %1459 = vmatprep.subr.mxu0 0.0
    %1460 = vmatpush1.msra.mxu0 0.0
    %1461 = vmatprep.subr.mxu0 0.0
    %1462 = vmatpush1.msra.mxu0 %v1435
    %1463 = vmatprep.subr.mxu0 0.0
    %1464 = vmatpush1.msra.mxu0 %v1434
    %1465 = vmatprep.subr.mxu0 0.0
    %1466 = vmatpush1.msra.mxu0 %v1433
    %1467 = vmatprep.subr.mxu0 0.0
    %1468 = vmatpush1.msra.mxu0 %v1432
    %1469 = vmatprep.subr.mxu0 0.0
    %1470 = vmatpush1.msra.mxu0 %v1431
    %1471 = vmatprep.subr.mxu0 0.0
    %1472 = vmatpush1.msra.mxu0 %v1430
    %1473 = vmatprep.subr.mxu0 0.0
    %1474 = vmatpush1.msra.mxu0 %v1429
    %1475 = vmatprep.subr.mxu0 0.0
    %1476 = vmatpush1.msra.mxu0 %v1428
    %1477 = vmatprep.subr.mxu0 0.0
    %1478 = vmatpush2.msra.mxu0 0.0
    %1479 = vmatprep.subr.mxu0 0.0
    %1480 = vmatpush2.msra.mxu0 0.0
    %1481 = vmatprep.subr.mxu0 0.0
    %1482 = vmatpush2.msra.mxu0 0.0
    %1483 = vmatprep.subr.mxu0 0.0
    %1484 = vmatpush2.msra.mxu0 0.0
    %1485 = vmatprep.subr.mxu0 0.0
    %1486 = vmatpush2.msra.mxu0 0.0
    %1487 = vmatprep.subr.mxu0 0.0
    %1488 = vmatpush2.msra.mxu0 0.0
    %1489 = vmatprep.subr.mxu0 0.0
    %1490 = vmatpush2.msra.mxu0 0.0
    %1491 = vmatprep.subr.mxu0 0.0
    %1492 = vmatpush2.msra.mxu0 0.0
    %1493 = vmatprep.subr.mxu0 0.0
    %1494 = vmatpush2.msra.mxu0 0.0
    %1495 = vmatprep.subr.mxu0 0.0
    %1496 = vmatpush2.msra.mxu0 0.0
    %1497 = vmatprep.subr.mxu0 0.0
    %1498 = vmatpush2.msra.mxu0 0.0
    %1499 = vmatprep.subr.mxu0 0.0
    %1500 = vmatpush2.msra.mxu0 0.0
    %1501 = vmatprep.subr.mxu0 0.0
    %1502 = vmatpush2.msra.mxu0 0.0
    %1503 = vmatprep.subr.mxu0 0.0
    %1504 = vmatpush2.msra.mxu0 0.0
    %1505 = vmatprep.subr.mxu0 0.0
    %1506 = vmatpush2.msra.mxu0 0.0
    %1507 = vmatprep.subr.mxu0 0.0
    %1508 = vmatpush2.msra.mxu0 0.0
    %1509 = vmatprep.mubr.f32.mxu0 0.0
    %1510 = vmatmul.mubr.f32.gmra.mxu0 %v683
    %v1511 = vpop.f32.mrf.mxu0
    %v1512 = vadd.f32 %v1443, %v1511
    %v1513 = vpop.f32.mrf.mxu0
    %1514 = vdwg.mxu0
    %v1515 = vsel %vm151, %v1512, -1e+30
    %1516 = vmax.xlane.f32.xlu0 %v1515
    %v1517 = vpop.xlane.xlu0 %1516
    %v1518 = vsub.f32 %v1515, %v1517
    %v1519 = vmul.f32 %v1518, 1.442695
    %v1520 = vpow.pop %v1519
    %1521 = vadd.xlane.f32.xlu0 %v1520
    %v1522 = vpop.xlane.xlu0 %1521
    %v1523 = vlog2.pop %v1522
    %v1524 = vmul.f32 %v1523, 0.6931472
    %v1525 = vsub.f32 %v1518, %v1524
    %v1526 = vmul.f32 %v761, %v1525
    %1527 = vadd.xlane.f32.xlu0 %v1526
    %v1528 = vpop.xlane.xlu0 %1527
    %v1529 = vsub.f32 0.0, %v1528
    %v1530 = vrot.slane %v1529, 4
    %v1531 = vadd.f32 %v1529, %v1530
    %v1532 = vrot.slane %v1531, 2
    %v1533 = vadd.f32 %v1531, %v1532
    %v1534 = vrot.slane %v1533, 1
    %v1535 = vadd.f32 %v1533, %v1534
    %v1536 = vmul.f32 %v1535, 0.125
    %v1537 = vrcp.pop %v1522
    %v1538 = vmul.f32 %v1520, %v1537
    %v1539 = vsub.f32 %v1538, %v761
    %v1540 = vmul.f32 %v1539, 0.125
    %1541 = vmatprep.subr.mxu0 0.0
    %1542 = vmatpush1.msra.mxu0 0.0
    %1543 = vmatprep.subr.mxu0 0.0
    %1544 = vmatpush1.msra.mxu0 0.0
    %1545 = vmatprep.subr.mxu0 0.0
    %1546 = vmatpush1.msra.mxu0 0.0
    %1547 = vmatprep.subr.mxu0 0.0
    %1548 = vmatpush1.msra.mxu0 0.0
    %1549 = vmatprep.subr.mxu0 0.0
    %1550 = vmatpush1.msra.mxu0 0.0
    %1551 = vmatprep.subr.mxu0 0.0
    %1552 = vmatpush1.msra.mxu0 0.0
    %1553 = vmatprep.subr.mxu0 0.0
    %1554 = vmatpush1.msra.mxu0 0.0
    %1555 = vmatprep.subr.mxu0 0.0
    %1556 = vmatpush1.msra.mxu0 0.0
    %1557 = vmatprep.subr.mxu0 0.0
    %1558 = vmatpush1.msra.mxu0 0.0
    %1559 = vmatprep.subr.mxu0 0.0
    %1560 = vmatpush1.msra.mxu0 0.0
    %1561 = vmatprep.subr.mxu0 0.0
    %1562 = vmatpush1.msra.mxu0 0.0
    %1563 = vmatprep.subr.mxu0 0.0
    %1564 = vmatpush1.msra.mxu0 0.0
    %1565 = vmatprep.subr.mxu0 0.0
    %1566 = vmatpush1.msra.mxu0 0.0
    %1567 = vmatprep.subr.mxu0 0.0
    %1568 = vmatpush1.msra.mxu0 0.0
    %1569 = vmatprep.subr.mxu0 0.0
    %1570 = vmatpush1.msra.mxu0 0.0
    %1571 = vmatprep.subr.mxu0 0.0
    %1572 = vmatpush1.msra.mxu0 %v1540
    %1573 = vmatprep.subr.mxu0 0.0
    %1574 = vmatpush2.msra.mxu0 0.0
    %1575 = vmatprep.subr.mxu0 0.0
    %1576 = vmatpush2.msra.mxu0 0.0
    %1577 = vmatprep.subr.mxu0 0.0
    %1578 = vmatpush2.msra.mxu0 0.0
    %1579 = vmatprep.subr.mxu0 0.0
    %1580 = vmatpush2.msra.mxu0 0.0
    %1581 = vmatprep.subr.mxu0 0.0
    %1582 = vmatpush2.msra.mxu0 0.0
    %1583 = vmatprep.subr.mxu0 0.0
    %1584 = vmatpush2.msra.mxu0 0.0
    %1585 = vmatprep.subr.mxu0 0.0
    %1586 = vmatpush2.msra.mxu0 0.0
    %1587 = vmatprep.subr.mxu0 0.0
    %1588 = vmatpush2.msra.mxu0 0.0
    %1589 = vmatprep.subr.mxu0 0.0
    %1590 = vmatpush2.msra.mxu0 0.0
    %1591 = vmatprep.subr.mxu0 0.0
    %1592 = vmatpush2.msra.mxu0 0.0
    %1593 = vmatprep.subr.mxu0 0.0
    %1594 = vmatpush2.msra.mxu0 0.0
    %1595 = vmatprep.subr.mxu0 0.0
    %1596 = vmatpush2.msra.mxu0 0.0
    %1597 = vmatprep.subr.mxu0 0.0
    %1598 = vmatpush2.msra.mxu0 0.0
    %1599 = vmatprep.subr.mxu0 0.0
    %1600 = vmatpush2.msra.mxu0 0.0
    %1601 = vmatprep.subr.mxu0 0.0
    %1602 = vmatpush2.msra.mxu0 0.0
    %1603 = vmatprep.subr.mxu0 0.0
    %1604 = vmatpush2.msra.mxu0 0.0
    %1605 = vmatprep.mubr.f32.mxu0 0.0
    %1606 = vmatmul.mubr.f32.gmra.mxu0 %v820
    %v1607 = vpop.f32.mrf.mxu0
    %v1608 = vadd.f32 0.0, %v1607
    %v1609 = vpop.f32.mrf.mxu0
    %1610 = vmatprep.mubr.f32.mxu0 0.0
    %1611 = vmatmul.mubr.f32.gmra.mxu0 %v823
    %v1612 = vpop.f32.mrf.mxu0
    %v1613 = vadd.f32 0.0, %v1612
    %v1614 = vpop.f32.mrf.mxu0
    %1615 = vmatprep.mubr.f32.mxu0 0.0
    %1616 = vmatmul.mubr.f32.gmra.mxu0 %v826
    %v1617 = vpop.f32.mrf.mxu0
    %v1618 = vadd.f32 0.0, %v1617
    %v1619 = vpop.f32.mrf.mxu0
    %1620 = vmatprep.mubr.f32.mxu0 0.0
    %1621 = vmatmul.mubr.f32.gmra.mxu0 %v829
    %v1622 = vpop.f32.mrf.mxu0
    %v1623 = vadd.f32 0.0, %v1622
    %v1624 = vpop.f32.mrf.mxu0
    %1625 = vmatprep.mubr.f32.mxu0 0.0
    %1626 = vmatmul.mubr.f32.gmra.mxu0 %v832
    %v1627 = vpop.f32.mrf.mxu0
    %v1628 = vadd.f32 0.0, %v1627
    %v1629 = vpop.f32.mrf.mxu0
    %1630 = vmatprep.mubr.f32.mxu0 0.0
    %1631 = vmatmul.mubr.f32.gmra.mxu0 %v835
    %v1632 = vpop.f32.mrf.mxu0
    %v1633 = vadd.f32 0.0, %v1632
    %v1634 = vpop.f32.mrf.mxu0
    %1635 = vmatprep.mubr.f32.mxu0 0.0
    %1636 = vmatmul.mubr.f32.gmra.mxu0 %v838
    %v1637 = vpop.f32.mrf.mxu0
    %v1638 = vadd.f32 0.0, %v1637
    %v1639 = vpop.f32.mrf.mxu0
    %1640 = vmatprep.mubr.f32.mxu0 0.0
    %1641 = vmatmul.mubr.f32.gmra.mxu0 %v841
    %v1642 = vpop.f32.mrf.mxu0
    %v1643 = vadd.f32 0.0, %v1642
    %v1644 = vpop.f32.mrf.mxu0
    %1645 = vdwg.mxu0
    %v1646 = vrot.slane %v1540, 4
    %v1647 = vadd.f32 %v1540, %v1646
    %v1648 = vrot.slane %v1647, 2
    %v1649 = vadd.f32 %v1647, %v1648
    %v1650 = vrot.slane %v1649, 1
    %v1651 = vadd.f32 %v1649, %v1650
    %v1652 = vmul.f32 %v1608, 0.1
    %v1653 = vmul.f32 %v1613, 0.1
    %v1654 = vmul.f32 %v1618, 0.1
    %v1655 = vmul.f32 %v1623, 0.1
    %v1656 = vmul.f32 %v1628, 0.1
    %v1657 = vmul.f32 %v1633, 0.1
    %v1658 = vmul.f32 %v1638, 0.1
    %v1659 = vmul.f32 %v1643, 0.1
    %v1660 = vsub.f32 %v1428, %v1652
    %v1661 = vsub.f32 %v1429, %v1653
    %v1662 = vsub.f32 %v1430, %v1654
    %v1663 = vsub.f32 %v1431, %v1655
    %v1664 = vsub.f32 %v1432, %v1656
    %v1665 = vsub.f32 %v1433, %v1657
    %v1666 = vsub.f32 %v1434, %v1658
    %v1667 = vsub.f32 %v1435, %v1659
    %v1668 = vmul.f32 %v1651, 0.1
    %v1669 = vsub.f32 %v1437, %v1668
    %v1670 = vadd.f32 %v1438, %v1536
    %vm1671 = vcmp.eq.s32.totalorder %v66, 1
    %v1672 = vsel %vm1671, %v1670, %v974
    %1673 = vst [vmem:[#allocation7] sm:$0x3] %v1672
    %1674 = vst [vmem:[#allocation8] sm:$0xff] %v1660
    %1675 = vst [vmem:[#allocation8 + $0x8] sm:$0xff] %v1661
    %1676 = vst [vmem:[#allocation8 + $0x10] sm:$0xff] %v1662
    %1677 = vst [vmem:[#allocation8 + $0x18] sm:$0xff] %v1663
    %1678 = vst [vmem:[#allocation8 + $0x20] sm:$0xff] %v1664
    %1679 = vst [vmem:[#allocation8 + $0x28] sm:$0xff] %v1665
    %1680 = vst [vmem:[#allocation8 + $0x30] sm:$0xff] %v1666
    %1681 = vst [vmem:[#allocation8 + $0x38] sm:$0xff] %v1667
    %1682 = vst [vmem:[#allocation10] sm:$0x1] %v1669
    %v1683 = vld [vmem:[%s2] sm:$0xff]
    %v1684 = vld [vmem:[%s2 + $0x8] sm:$0xff]
    %v1685 = vld [vmem:[%s3] sm:$0xff]
    %v1686 = vld [vmem:[%s3 + $0x8] sm:$0xff]
    %v1688 = vlaneseq
    %v1689 = vshrl.u32 %v1688, 7
    %v1690 = vsub.s32 0, %v1689
    %v1691 = vrot.slane %v1669, %v1690
    %v1694 = vsel %vm75, %v1683, 0
    %v1697 = vsel %vm75, %v1684, 0
    %1699 = vmatprep.subr.mxu0 0.0
    %1700 = vmatpush1.msra.mxu0 0.0
    %1701 = vmatprep.subr.mxu0 0.0
    %1702 = vmatpush1.msra.mxu0 0.0
    %1703 = vmatprep.subr.mxu0 0.0
    %1704 = vmatpush1.msra.mxu0 0.0
    %1705 = vmatprep.subr.mxu0 0.0
    %1706 = vmatpush1.msra.mxu0 0.0
    %1707 = vmatprep.subr.mxu0 0.0
    %1708 = vmatpush1.msra.mxu0 0.0
    %1709 = vmatprep.subr.mxu0 0.0
    %1710 = vmatpush1.msra.mxu0 0.0
    %1711 = vmatprep.subr.mxu0 0.0
    %1712 = vmatpush1.msra.mxu0 0.0
    %1713 = vmatprep.subr.mxu0 0.0
    %1714 = vmatpush1.msra.mxu0 0.0
    %1715 = vmatprep.subr.mxu0 0.0
    %1716 = vmatpush1.msra.mxu0 %v1667
    %1717 = vmatprep.subr.mxu0 0.0
    %1718 = vmatpush1.msra.mxu0 %v1666
    %1719 = vmatprep.subr.mxu0 0.0
    %1720 = vmatpush1.msra.mxu0 %v1665
    %1721 = vmatprep.subr.mxu0 0.0
    %1722 = vmatpush1.msra.mxu0 %v1664
    %1723 = vmatprep.subr.mxu0 0.0
    %1724 = vmatpush1.msra.mxu0 %v1663
    %1725 = vmatprep.subr.mxu0 0.0
    %1726 = vmatpush1.msra.mxu0 %v1662
    %1727 = vmatprep.subr.mxu0 0.0
    %1728 = vmatpush1.msra.mxu0 %v1661
    %1729 = vmatprep.subr.mxu0 0.0
    %1730 = vmatpush1.msra.mxu0 %v1660
    %1731 = vmatprep.subr.mxu0 0.0
    %1732 = vmatpush2.msra.mxu0 0.0
    %1733 = vmatprep.subr.mxu0 0.0
    %1734 = vmatpush2.msra.mxu0 0.0
    %1735 = vmatprep.subr.mxu0 0.0
    %1736 = vmatpush2.msra.mxu0 0.0
    %1737 = vmatprep.subr.mxu0 0.0
    %1738 = vmatpush2.msra.mxu0 0.0
    %1739 = vmatprep.subr.mxu0 0.0
    %1740 = vmatpush2.msra.mxu0 0.0
    %1741 = vmatprep.subr.mxu0 0.0
    %1742 = vmatpush2.msra.mxu0 0.0
    %1743 = vmatprep.subr.mxu0 0.0
    %1744 = vmatpush2.msra.mxu0 0.0
    %1745 = vmatprep.subr.mxu0 0.0
    %1746 = vmatpush2.msra.mxu0 0.0
    %1747 = vmatprep.subr.mxu0 0.0
    %1748 = vmatpush2.msra.mxu0 0.0
    %1749 = vmatprep.subr.mxu0 0.0
    %1750 = vmatpush2.msra.mxu0 0.0
    %1751 = vmatprep.subr.mxu0 0.0
    %1752 = vmatpush2.msra.mxu0 0.0
    %1753 = vmatprep.subr.mxu0 0.0
    %1754 = vmatpush2.msra.mxu0 0.0
    %1755 = vmatprep.subr.mxu0 0.0
    %1756 = vmatpush2.msra.mxu0 0.0
    %1757 = vmatprep.subr.mxu0 0.0
    %1758 = vmatpush2.msra.mxu0 0.0
    %1759 = vmatprep.subr.mxu0 0.0
    %1760 = vmatpush2.msra.mxu0 0.0
    %1761 = vmatprep.subr.mxu0 0.0
    %1762 = vmatpush2.msra.mxu0 0.0
    %1763 = vmatprep.mubr.f32.mxu0 0.0
    %1764 = vmatmul.mubr.f32.gmra.mxu0 %v1694
    %v1765 = vpop.f32.mrf.mxu0
    %v1766 = vadd.f32 %v1691, %v1765
    %v1767 = vpop.f32.mrf.mxu0
    %1768 = vmatprep.mubr.f32.mxu0 0.0
    %1769 = vmatmul.mubr.f32.gmra.mxu0 %v1697
    %v1770 = vpop.f32.mrf.mxu0
    %v1771 = vadd.f32 %v1691, %v1770
    %v1772 = vpop.f32.mrf.mxu0
    %1773 = vdwg.mxu0
    %v1774 = vsel %vm151, %v1766, -1e+30
    %v1775 = vsel %vm151, %v1771, -1e+30
    %1776 = vmax.xlane.f32.xlu0 %v1774
    %v1777 = vpop.xlane.xlu0 %1776
    %1778 = vmax.xlane.f32.xlu0 %v1775
    %v1779 = vpop.xlane.xlu0 %1778
    %vm1780 = vcmp.eq.f32.partialorder %v1774, %v1777
    %vm1781 = vcmp.eq.f32.partialorder %v1775, %v1779
    %v1782 = vsel %vm1780, %v150, 128
    %v1783 = vsel %vm1781, %v150, 128
    %v1784 = vand.u32 %v1782, 65535
    %v1785 = vshra.s32 %v1782, 16
    %v1786 = vcvt.s32.f32 %v1784
    %v1787 = vcvt.s32.f32 %v1785
    %1788 = vmin.xlane.f32.xlu0 %v1787
    %v1789 = vpop.xlane.xlu0 %1788
    %vm1790 = vcmp.eq.f32.partialorder %v1787, %v1789
    %v1791 = vsel %vm1790, %v1786, inf
    %1792 = vmin.xlane.f32.xlu0 %v1791
    %v1793 = vpop.xlane.xlu0 %1792
    %v1794 = vcvt.f32.s32 %v1793
    %v1795 = vcvt.f32.s32 %v1789
    %v1796 = vshll.u32 %v1795, 16
    %v1797 = vadd.s32 %v1796, %v1794
    %v1798 = vand.u32 %v1783, 65535
    %v1799 = vshra.s32 %v1783, 16
    %v1800 = vcvt.s32.f32 %v1798
    %v1801 = vcvt.s32.f32 %v1799
    %1802 = vmin.xlane.f32.xlu0 %v1801
    %v1803 = vpop.xlane.xlu0 %1802
    %vm1804 = vcmp.eq.f32.partialorder %v1801, %v1803
    %v1805 = vsel %vm1804, %v1800, inf
    %1806 = vmin.xlane.f32.xlu0 %v1805
    %v1807 = vpop.xlane.xlu0 %1806
    %v1808 = vcvt.f32.s32 %v1807
    %v1809 = vcvt.f32.s32 %v1803
    %v1810 = vshll.u32 %v1809, 16
    %v1811 = vadd.s32 %v1810, %v1808
    %vm1812 = vcmp.eq.s32.totalorder %v1797, %v1685
    %vm1813 = vcmp.eq.s32.totalorder %v1811, %v1686
    %v1814 = vsel %vm1812, 1, 0
    %v1815 = vsel %vm1813, 1, 0
    %vm1816 = vcmask 7168
    %v1817 = vsel %vm1816, %v1814, 0
    %v1818 = vsel %vm1816, %v1815, 0
    %v1819 = vadd.s32 %v1817, %v1818
    %v1820 = vrot.slane %v1819, 4
    %v1821 = vadd.s32 %v1819, %v1820
    %v1822 = vrot.slane %v1821, 2
    %v1823 = vadd.s32 %v1821, %v1822
    %v1824 = vrot.slane %v1823, 1
    %v1825 = vadd.s32 %v1823, %v1824
    %1826 = vset.pattern.permute.xlu0 0
    %1827 = vperm.xlu0 %1826, %v1825
    %v1828 = vpop.permute.xlu0 %1827
    %1829 = vst [vmem:[#allocation11] sm:$0x1] %v1828
    // Predicated region
    $region34: #{run_trainer.1} parent=1 // pred_check
      _
    $region35: #{run_trainer.1} parent=1 // pred_check_branch
      %1831 = sbr.rel (0) target = $region37
    $region36: #{run_trainer.1} parent=1 // pred_region
      %s1833 = ssub.s32 32, 32
      %1834 = vsyncadd [#allocation4], %s1833
      %s1836 = sshll.u32 [#allocation7], 4
      %s1837 = int_to_ptr.vmem [resolvable:$true] %s1836
      %1839 = dma.vmem_to_hbm [thread:$0]  %s1837, 32, %s6, [#allocation4]
    $region37: #{run_trainer.1} parent=1 // pred_fallthru
      _
    // Predicated region
    $region38: #{run_trainer.1} parent=1 // pred_check
      _
    $region39: #{run_trainer.1} parent=1 // pred_check_branch
      %1841 = sbr.rel (0) target = $region41
    $region40: #{run_trainer.1} parent=1 // pred_region
      %s1843 = ssub.s32 1024, 1024
      %1844 = vsyncadd [#allocation9], %s1843
      %s1845 = sshll.u32 [#allocation8], 4
      %s1846 = int_to_ptr.vmem [resolvable:$true] %s1845
      %1851 = dma.vmem_to_hbm [thread:$0]  %s1846, 1024, %s7, [#allocation9], 128, 128, 8
    $region41: #{run_trainer.1} parent=1 // pred_fallthru
      _
    // Predicated region
    $region42: #{run_trainer.1} parent=1 // pred_check
      _
    $region43: #{run_trainer.1} parent=1 // pred_check_branch
      %1853 = sbr.rel (0) target = $region45
    $region44: #{run_trainer.1} parent=1 // pred_region
      %s1855 = ssub.s32 16, 16
      %1856 = vsyncadd [#allocation9], %s1855
      %s1858 = sshll.u32 [#allocation10], 4
      %s1859 = int_to_ptr.vmem [resolvable:$true] %s1858
      %1861 = dma.vmem_to_hbm [thread:$0]  %s1859, 16, %s8, [#allocation9]
    $region45: #{run_trainer.1} parent=1 // pred_fallthru
      _
    // Predicated region
    $region46: #{run_trainer.1} parent=1 // pred_check
      _
    $region47: #{run_trainer.1} parent=1 // pred_check_branch
      %1863 = sbr.rel (0) target = $region49
    $region48: #{run_trainer.1} parent=1 // pred_region
      %s1865 = ssub.s32 16, 16
      %1866 = vsyncadd [#allocation12], %s1865
      %s1868 = sshll.u32 [#allocation11], 4
      %s1869 = int_to_ptr.vmem [resolvable:$true] %s1868
      %1871 = dma.vmem_to_hbm [thread:$0]  %s1869, 16, %s9, [#allocation12]
    $region49: #{run_trainer.1} parent=1 // pred_fallthru
      _
    // Predicated region
    $region50: #{run_trainer.1} parent=1 // pred_check
      _
    $region51: #{run_trainer.1} parent=1 // pred_check_branch
      %1873 = sbr.rel (0) target = $region53
    $region52: #{run_trainer.1} parent=1 // pred_region
      %1874 = dma.done [#allocation4], 32
    $region53: #{run_trainer.1} parent=1 // pred_fallthru
      _
    // Predicated region
    $region54: #{run_trainer.1} parent=1 // pred_check
      _
    $region55: #{run_trainer.1} parent=1 // pred_check_branch
      %1876 = sbr.rel (0) target = $region57
    $region56: #{run_trainer.1} parent=1 // pred_region
      %1877 = dma.done [#allocation9], 1024
    $region57: #{run_trainer.1} parent=1 // pred_fallthru
      _
    // Predicated region
    $region58: #{run_trainer.1} parent=1 // pred_check
      _
    $region59: #{run_trainer.1} parent=1 // pred_check_branch
      %1879 = sbr.rel (0) target = $region61
    $region60: #{run_trainer.1} parent=1 // pred_region
      %1880 = dma.done [#allocation9], 16
    $region61: #{run_trainer.1} parent=1 // pred_fallthru
      _
    // Predicated region
    $region62: #{run_trainer.1} parent=1 // pred_check
      _
    $region63: #{run_trainer.1} parent=1 // pred_check_branch
      %1882 = sbr.rel (0) target = $region65
    $region64: #{run_trainer.1} parent=1 // pred_region
      %1883 = dma.done [#allocation12], 16
    $region65: #{run_trainer.1} parent=1 // pred_fallthru
      _
    %1884 = vsyncpa [#allocation3], 1
    %1885 = vsyncpa [#allocation6], 1
    %1886 = vsyncpa [#allocation4], 1
    %1887 = vsyncpa [#allocation9], 1
    %1888 = vsyncpa [#allocation12], 1

</llo_original>
